<compile_context>
chip_gen: v7x
topology: tpu7x:2x2x1
jax: 0.10.0
libtpu: 0.0.40
codegen_flags: <defaults>
</compile_context>

<pallas_src>
import functools

import jax
import jax.numpy as jnp
from jax import lax
from jax.experimental import pallas as pl
from jax.experimental.pallas import tpu as pltpu

BF16 = jnp.bfloat16


def _cdiv(a, b):
    return -(-a // b)


def _round_up(x, m):
    return _cdiv(x, m) * m


# --------------------------- hardware-aware defaults --------------------------

_HW_DEFAULTS = None


def _hw_defaults():
    """(tile_rows, vmem_limit_bytes) sized per TPU generation."""
    global _HW_DEFAULTS
    if _HW_DEFAULTS is not None:
        return _HW_DEFAULTS
    try:
        vmem_cap = int(pltpu.get_tpu_info().vmem_capacity_bytes)
    except Exception:
        vmem_cap = None
    if vmem_cap is not None and vmem_cap >= 100 * 1024 * 1024:
        # 128 MiB VMEM parts (v5e/v6e/v5p...): bigger row tiles, deeper buffers.
        tile_rows, vmem_limit = 32, 96 * 1024 * 1024
    else:
        # v7x-class (64 MiB VMEM) or unknown: conservative sizing.
        tile_rows, vmem_limit = 16, 48 * 1024 * 1024
        if vmem_cap is not None:
            vmem_limit = min(vmem_limit, (vmem_cap * 3) // 4)
    _HW_DEFAULTS = (tile_rows, vmem_limit)
    return _HW_DEFAULTS


_BUF1_OK = None


def _buffered1_supported():
    """Probe pipeline_mode=pl.Buffered(1) so constant weight blocks use a single
    VMEM buffer (saves ~4.7 MiB per 512ch layer); falls back cleanly if the
    installed Pallas rejects it."""
    global _BUF1_OK
    if _BUF1_OK is not None:
        return _BUF1_OK
    try:
        def _k(x_ref, o_ref):
            o_ref[...] = x_ref[...] + 1.0

        f = pl.pallas_call(
            _k,
            out_shape=jax.ShapeDtypeStruct((16, 128), jnp.float32),
            grid=(2,),
            in_specs=[pl.BlockSpec((8, 128), lambda i: (i, 0),
                                   pipeline_mode=pl.Buffered(1))],
            out_specs=pl.BlockSpec((8, 128), lambda i: (i, 0)),
        )
        jax.block_until_ready(f(jnp.zeros((16, 128), jnp.float32)))
        _BUF1_OK = True
    except Exception:
        _BUF1_OK = False
    return _BUF1_OK


# ----------------------------- conv kernel ----------------------------------

def _conv_kernel(x_ref, h_ref, w_ref, b_ref, *rest,
                 offsets, m_rows, halo_rows, relu, has_proj):
    # x_ref : (1, m_rows, Cin)        body rows of the padded, flattened input
    # h_ref : (1, 1, halo_rows, Cin)  halo rows (rows immediately after the body)
    # w_ref : (KK, Cin, Cout)         conv weights (bf16)
    # b_ref : (1, Cout)               bias (f32)
    # rest  : [wp_ref (Cout,Pp) bf16, bp_ref (1,Pp) f32,] o_ref, win(scratch)
    if has_proj:
        wp_ref, bp_ref, o_ref, win = rest
    else:
        o_ref, win = rest

    # Assemble the halo-extended window once in VMEM scratch (replaces the old
    # HBM-materialized stacked windows).
    win[pl.ds(0, m_rows), :] = x_ref[0]
    win[pl.ds(m_rows, halo_rows), :] = h_ref[0, 0]

    cout = w_ref.shape[-1]
    # bias folded into the accumulator init; the += jnp.dot chain stays free of
    # interleaved VPU work so Mosaic can keep accumulation on the MXU path.
    acc = jnp.broadcast_to(b_ref[...].astype(jnp.float32), (m_rows, cout))
    for t, off in enumerate(offsets):
        acc = acc + jnp.dot(win[pl.ds(off, m_rows), :], w_ref[t],
                            preferred_element_type=jnp.float32)
    if relu:
        acc = jnp.maximum(acc, 0.0)
    if has_proj:
        # fused 1x1 (NL='None') head: lane-padded projection, lane-dense store
        acc = (jnp.dot(acc.astype(wp_ref.dtype), wp_ref[...],
                       preferred_element_type=jnp.float32)
               + bp_ref[...].astype(jnp.float32))
    o_ref[0, 0] = acc.astype(o_ref.dtype)


def conv2d_same(x, w, b, *, ksize, dilation=1, relu=True, proj=None,
                tile_rows=None, vmem_limit=None):
    """Stride-1 'same' conv (+ optional fused 1x1 projection) as a Pallas kernel.

    x    : (N, H, W, Cx)      activations; Cx may exceed the layer's nominal Cin
                              (zero channels from a lane-padded producer).
    w    : (K*K, Cin, Cout)   conv weights, tap-major (kh, kw) ordering
    b    : (Cout,)            conv bias
    proj : optional (wp (Cout, Pout), bp (Pout,)) fused 1x1 conv, no ReLU after.
    Returns (N, H, W, Cout_padded>=128) bf16, or (N, H, W, Pout) f32 with proj.
    """
    if tile_rows is None or vmem_limit is None:
        tr_d, vl_d = _hw_defaults()
        tile_rows = tr_d if tile_rows is None else tile_rows
        vmem_limit = vl_d if vmem_limit is None else vmem_limit

    N, H, W, Cx = x.shape
    K = ksize
    KK, Cin_w, Cout = w.shape
    pad = dilation * (K // 2)

    x = x.astype(BF16)
    w = w.astype(BF16)
    b = b.astype(jnp.float32)

    # Match the (possibly channel-padded) activation with zero weight rows.
    if Cin_w < Cx:
        w = jnp.pad(w, ((0, 0), (0, Cx - Cin_w), (0, 0)))

    # Lane-dense output channels: pad Cout<128 to 128 (zero weights/bias).
    if proj is None:
        cout_p = _round_up(max(Cout, 128), 128)
        if cout_p != Cout:
            w = jnp.pad(w, ((0, 0), (0, 0), (0, cout_p - Cout)))
            b = jnp.pad(b, (0, cout_p - Cout))
    else:
        cout_p = Cout
    b32 = b.reshape(1, cout_p)

    # Geometry: padded width rounded to a sublane multiple (8-aligned kh tap
    # offsets); row tiles from a cdiv grid (no TH=1 cliff for awkward H).
    Wp = _round_up(W + 2 * pad, 8)
    pad_right = Wp - W - pad
    T = _cdiv(H, max(1, min(tile_rows, H)))
    TH = _cdiv(H, T)
    m_tile = TH * Wp
    offsets = tuple(kh * dilation * Wp + kw * dilation
                    for kh in range(K) for kw in range(K))
    halo_rows = _round_up(max(offsets[-1], 1), 8)

    total_rows = T * m_tile + halo_rows
    bottom_rows = max(_cdiv(total_rows, Wp) - pad - H, pad)
    x_pad = jnp.pad(x, ((0, 0), (pad, bottom_rows), (pad, pad_right), (0, 0)))
    R = (pad + H + bottom_rows) * Wp
    x_flat = x_pad.reshape(N, R, Cx)

    # Tiny per-tile halo gather (~2*pad/TH of the activation); the body tiles
    # are read directly from x_flat by the BlockSpec (no stacked windows).
    x_halo = jnp.stack(
        [x_flat[:, (i + 1) * m_tile:(i + 1) * m_tile + halo_rows, :]
         for i in range(T)], axis=1)

    if proj is None:
        cout_store = cout_p
        out_dtype = BF16
        extra_in, extra_specs = [], []
    else:
        wp_, bp_ = proj
        pout = wp_.shape[-1]
        pout_pad = _round_up(max(pout, 128), 128)   # lane-dense store
        wp_p = jnp.pad(wp_.astype(BF16), ((0, 0), (0, pout_pad - pout)))
        bp_p = jnp.pad(bp_.astype(jnp.float32).reshape(1, pout),
                       ((0, 0), (0, pout_pad - pout)))
        cout_store = pout_pad
        out_dtype = jnp.float32
        extra_in = [wp_p, bp_p]
        extra_specs = [
            pl.BlockSpec((Cout, pout_pad), lambda n, i: (0, 0)),
            pl.BlockSpec((1, pout_pad), lambda n, i: (0, 0)),
        ]

    w_spec_kwargs = {}
    if _buffered1_supported():
        # constant index map -> a single VMEM buffer is enough for the weights
        w_spec_kwargs["pipeline_mode"] = pl.Buffered(1)

    kernel = functools.partial(_conv_kernel, offsets=offsets, m_rows=m_tile,
                               halo_rows=halo_rows, relu=relu,
                               has_proj=proj is not None)

    out = pl.pallas_call(
        kernel,
        out_shape=jax.ShapeDtypeStruct((N, T, m_tile, cout_store), out_dtype),
        grid=(N, T),
        in_specs=[
            pl.BlockSpec((1, m_tile, Cx), lambda n, i: (n, i, 0)),
            pl.BlockSpec((1, 1, halo_rows, Cx), lambda n, i: (n, i, 0, 0)),
            pl.BlockSpec((KK, Cx, cout_p), lambda n, i: (0, 0, 0),
                         **w_spec_kwargs),
            pl.BlockSpec((1, cout_p), lambda n, i: (0, 0)),
        ] + extra_specs,
        out_specs=pl.BlockSpec((1, 1, m_tile, cout_store),
                               lambda n, i: (n, i, 0, 0)),
        scratch_shapes=[pltpu.VMEM((m_tile + halo_rows, Cx), BF16)],
        compiler_params=pltpu.CompilerParams(
            dimension_semantics=("parallel", "parallel"),   # megacore-safe
            vmem_limit_bytes=vmem_limit),
    )(x_flat, x_halo, w, b32, *extra_in)

    out = out.reshape(N, T * TH, Wp, cout_store)[:, :H, :W, :]
    if proj is not None:
        out = out[..., :proj[0].shape[-1]]
    return out


# ----------------------------- maxpool (glue) --------------------------------

def maxpool2x2(x):
    # TODO(synk): fuse the 2x2 pool into the preceding conv's store path; kept
    # as a tiny XLA windowed max for now.
    N, H, W, C = x.shape
    return jnp.max(x.reshape(N, H // 2, 2, W // 2, 2, C), axis=(2, 4))


# --------------------- bilinear upsample (align_corners) ---------------------

def _interp_matrix(out_size, in_size):
    if in_size == 1:
        return jnp.ones((out_size, 1), jnp.float32)
    scale = (in_size - 1) / (out_size - 1) if out_size > 1 else 0.0
    src = jnp.arange(out_size, dtype=jnp.float32) * scale
    i0 = jnp.clip(jnp.floor(src).astype(jnp.int32), 0, in_size - 2)
    frac = src - i0.astype(jnp.float32)
    cols = jnp.arange(in_size)[None, :]
    A = ((cols == i0[:, None]).astype(jnp.float32) * (1.0 - frac)[:, None]
         + (cols == (i0 + 1)[:, None]).astype(jnp.float32) * frac[:, None])
    return A


def _upsample_kernel(ah_ref, awt_ref, x_ref, o_ref):
    t = jnp.dot(ah_ref[...], x_ref[0], preferred_element_type=jnp.float32)
    o_ref[0] = jnp.dot(t, awt_ref[...],
                       preferred_element_type=jnp.float32).astype(o_ref.dtype)


def bilinear_upsample_align_corners(x, out_hw, row_tile=128):
    # x: (N, Hc, Wc) single-channel maps -> (N, Ho, Wo), align_corners=True.
    # Output rows are tiled so the per-step f32 block stays VMEM-bounded.
    N, Hc, Wc = x.shape
    Ho, Wo = out_hw
    th = max(1, min(row_tile, Ho))
    Tn = _cdiv(Ho, th)
    Ho_pad = Tn * th
    ah = jnp.pad(_interp_matrix(Ho, Hc), ((0, Ho_pad - Ho), (0, 0)))
    awt = _interp_matrix(Wo, Wc).T
    out = pl.pallas_call(
        _upsample_kernel,
        out_shape=jax.ShapeDtypeStruct((N, Ho_pad, Wo), jnp.float32),
        grid=(N, Tn),
        in_specs=[
            pl.BlockSpec((th, Hc), lambda n, t: (t, 0)),
            pl.BlockSpec((Wc, Wo), lambda n, t: (0, 0)),
            pl.BlockSpec((1, Hc, Wc), lambda n, t: (n, 0, 0)),
        ],
        out_specs=pl.BlockSpec((1, th, Wo), lambda n, t: (n, t, 0)),
        compiler_params=pltpu.CompilerParams(
            dimension_semantics=("parallel", "parallel")),
    )(ah, awt, x.astype(jnp.float32))
    return out[:, :Ho, :]


# ----------------------------- model definition ------------------------------

def build_layer_specs():
    specs = []
    in_c = 3
    # frontend: VGG conv1_1 .. conv4_3 (3 max-pools) -> C4
    for v in [64, 64, 'M', 128, 128, 'M', 256, 256, 256, 'M', 512, 512, 512]:
        if v == 'M':
            specs.append(('pool',))
        else:
            specs.append(('conv', in_c, v, 3, 1, True))
            in_c = v
    # back_encoder: three dilated (d=2) 3x3 convs, 512 -> 512
    for v in [512, 512, 512]:
        specs.append(('conv', in_c, v, 3, 2, True))
        in_c = v
    # density_pred head (eval-mode BN folded; last conv NL='None')
    specs.append(('conv', 512, 128, 3, 1, True))
    specs.append(('conv', 128, 64, 3, 1, True))
    specs.append(('conv', 64, 1, 1, 1, False))
    return tuple(specs)


def init_params(key, specs):
    # deterministic synthetic init mirroring _initialize_weights:
    # conv weights ~ N(0, 0.01), biases = 0.  (pretrained VGG load is skipped)
    params = []
    for spec in specs:
        if spec[0] == 'pool':
            params.append(None)
            continue
        _, cin, cout, k, _dil, _relu = spec
        key, wk = jax.random.split(key)
        w = 0.01 * jax.random.normal(wk, (k * k, cin, cout), jnp.float32)
        b = jnp.zeros((cout,), jnp.float32)
        params.append((w, b))
    return params


def crowd_msb_cbam_forward(x_nchw, specs, params):
    N, _, H, W = x_nchw.shape
    tile_rows, vmem_limit = _hw_defaults()
    x = jnp.transpose(x_nchw, (0, 2, 3, 1)).astype(BF16)  # NHWC, bf16
    # pad the 3-channel input to a sublane-friendly channel count
    cpad = _round_up(x.shape[-1], 8) - x.shape[-1]
    if cpad:
        x = jnp.pad(x, ((0, 0), (0, 0), (0, 0), (0, cpad)))
    i = 0
    n_layers = len(specs)
    while i < n_layers:
        spec = specs[i]
        if spec[0] == 'pool':
            x = maxpool2x2(x)
            i += 1
            continue
        _, _cin, _cout, k, dil, relu = spec
        w, b = params[i]
        nxt = specs[i + 1] if i + 1 < n_layers else None
        if (nxt is not None and nxt[0] == 'conv' and nxt[3] == 1 and not nxt[5]):
            # fuse the 1x1 Cout=1 head into this 3x3 conv (projection epilogue)
            wn, bn = params[i + 1]               # wn: (1, Cmid, 1)
            x = conv2d_same(x, w, b, ksize=k, dilation=dil, relu=relu,
                            proj=(wn[0], bn),
                            tile_rows=tile_rows, vmem_limit=vmem_limit)
            i += 2
        else:
            x = conv2d_same(x, w, b, ksize=k, dilation=dil, relu=relu,
                            tile_rows=tile_rows, vmem_limit=vmem_limit)
            i += 1
    # x: (N, H/8, W/8, 1) f32 density map at stride 8
    reg = x[..., 0].astype(jnp.float32)
    # cfg.density_stride == 1 branch: bilinear, align_corners=True, to input size
    reg_up = bilinear_upsample_align_corners(reg, (H, W))
    return reg_up[:, None, :, :]  # NCHW (N, 1, H, W)


# --------------------------- conv correctness check --------------------------

def _conv_reference(x, w, b, *, ksize, dilation, relu):
    K = ksize
    pad = dilation * (K // 2)
    Cin, Cout = w.shape[1], w.shape[2]
    w_hwio = w.reshape(K, K, Cin, Cout)
    y = lax.conv_general_dilated(
        x.astype(BF16), w_hwio.astype(BF16),
        window_strides=(1, 1), padding=[(pad, pad), (pad, pad)],
        rhs_dilation=(dilation, dilation),
        dimension_numbers=('NHWC', 'HWIO', 'NHWC'),
        preferred_element_type=jnp.float32)
    y = y + b.astype(jnp.float32)
    return jnp.maximum(y, 0.0) if relu else y


def _self_test_conv(key):
    # weight-ordering / windowing unit test against XLA's conv (review concern)
    for dil in (1, 2):
        k1, k2, k3, key = jax.random.split(key, 4)
        x = jax.random.normal(k1, (1, 8, 8, 8), jnp.float32)
        w = 0.2 * jax.random.normal(k2, (9, 8, 16), jnp.float32)
        b = 0.1 * jax.random.normal(k3, (16,), jnp.float32)
        got = conv2d_same(x, w, b, ksize=3, dilation=dil, relu=True)[..., :16]
        want = _conv_reference(x, w, b, ksize=3, dilation=dil, relu=True)
        err = float(jnp.max(jnp.abs(got.astype(jnp.float32) - want)))
        assert err < 5e-2, f"conv self-test failed (dilation={dil}): {err}"


# ----------------------------------- main -------------------------------------

if __name__ == "__main__":
    key = jax.random.PRNGKey(0)
    kx, kp, kt = jax.random.split(key, 3)

    _self_test_conv(kt)

    # small input consistent with the VGG frontend (3 channels, /8-divisible)
    x = jax.random.normal(kx, (2, 3, 32, 32), jnp.float32)

    specs = build_layer_specs()
    params = init_params(kp, specs)

    fwd = jax.jit(crowd_msb_cbam_forward, static_argnums=(1,))
    out = fwd(x, specs, params)
    out = jax.block_until_ready(out)

    assert out.shape == (2, 1, 32, 32), out.shape
    assert bool(jnp.all(jnp.isfinite(out)))
    print("KERNEL_OK")
</pallas_src>

<mosaic_0001>
module attributes {stable_mosaic.version = 11 : i64} {
  func.func @_k(%arg0: i32, %arg1: memref<8x128xf32, #tpu.memory_space<vmem>>, %arg2: memref<8x128xf32, #tpu.memory_space<vmem>>) attributes {dimension_semantics = [#tpu.dimension_semantics<arbitrary>], iteration_bounds = array<i64: 2>, scalar_prefetch = 0 : i64, scratch_operands = 0 : i64, tpu.core_type = #tpu.core_type<tc>, window_params = [{pipeline_mode = #tpu.pipeline_mode<synchronous>, transform_indices = @transform_0, window_bounds = array<i64: 8, 128>}, {transform_indices = @transform_1, window_bounds = array<i64: 8, 128>}]} {
    %c0 = arith.constant 0 : index
    %c0_0 = arith.constant 0 : index
    %0 = vector.load %arg1[%c0, %c0_0] : memref<8x128xf32, #tpu.memory_space<vmem>>, vector<8x128xf32>
    %cst = arith.constant 1.000000e+00 : f32
    %1 = vector.broadcast %cst : f32 to vector<8x128xf32>
    %2 = arith.addf %0, %1 : vector<8x128xf32>
    %c0_1 = arith.constant 0 : index
    %c0_2 = arith.constant 0 : index
    %3 = vector.load %arg2[%c0_1, %c0_2] : memref<8x128xf32, #tpu.memory_space<vmem>>, vector<8x128xf32>
    tpu.vector_store %arg2[%c0_1, %c0_2], %2 {strides = array<i32>} : memref<8x128xf32, #tpu.memory_space<vmem>>, vector<8x128xf32>,
    return
  }
  func.func @transform_0(%arg0: i32) -> (i32, i32) {
    %c0_i32 = arith.constant 0 : i32
    %c0_i32_0 = arith.constant 0 : i32
    return %arg0, %c0_i32 : i32, i32
  }
  func.func @transform_1(%arg0: i32) -> (i32, i32) {
    %c0_i32 = arith.constant 0 : i32
    %c0_i32_0 = arith.constant 0 : i32
    return %arg0, %c0_i32 : i32, i32
  }
}

module attributes {stable_mosaic.version = 11 : i64} {
  func.func @_conv_kernel(%arg0: i32, %arg1: i32, %arg2: memref<1x128x8xbf16, #tpu.memory_space<vmem>>, %arg3: memref<1x1x40x8xbf16, #tpu.memory_space<vmem>>, %arg4: memref<9x8x128xbf16, #tpu.memory_space<vmem>>, %arg5: memref<1x128xf32, #tpu.memory_space<vmem>>, %arg6: memref<1x1x128x128xbf16, #tpu.memory_space<vmem>>, %arg7: memref<168x8xbf16, #tpu.memory_space<vmem>>) attributes {dimension_semantics = [#tpu.dimension_semantics<parallel>, #tpu.dimension_semantics<parallel>], iteration_bounds = array<i64: 1, 1>, scalar_prefetch = 0 : i64, scratch_operands = 1 : i64, tpu.core_type = #tpu.core_type<tc>, window_params = [{transform_indices = @transform_0, window_bounds = array<i64: 1, 128, 8>}, {transform_indices = @transform_1, window_bounds = array<i64: 1, 1, 40, 8>}, {pipeline_mode = #tpu.pipeline_mode<synchronous>, transform_indices = @transform_2, window_bounds = array<i64: 9, 8, 128>}, {pipeline_mode = #tpu.pipeline_mode<synchronous>, transform_indices = @transform_3, window_bounds = array<i64: 1, 128>}, {transform_indices = @transform_4, window_bounds = array<i64: 1, 1, 128, 128>}]} {
    %c0 = arith.constant 0 : index
    %c0_0 = arith.constant 0 : index
    %c0_1 = arith.constant 0 : index
    %0 = vector.load %arg2[%c0, %c0_0, %c0_1] : memref<1x128x8xbf16, #tpu.memory_space<vmem>>, vector<1x128x8xbf16>
    %1 = vector.shape_cast %0 : vector<1x128x8xbf16> to vector<128x8xbf16>
    %c0_2 = arith.constant 0 : index
    %c0_3 = arith.constant 0 : index
    %2 = vector.load %arg7[%c0_2, %c0_3] : memref<168x8xbf16, #tpu.memory_space<vmem>>, vector<128x8xbf16>
    tpu.vector_store %arg7[%c0_2, %c0_3], %1 {strides = array<i32>} : memref<168x8xbf16, #tpu.memory_space<vmem>>, vector<128x8xbf16>,
    %c0_4 = arith.constant 0 : index
    %c0_5 = arith.constant 0 : index
    %c0_6 = arith.constant 0 : index
    %c0_7 = arith.constant 0 : index
    %3 = vector.load %arg3[%c0_4, %c0_5, %c0_6, %c0_7] : memref<1x1x40x8xbf16, #tpu.memory_space<vmem>>, vector<1x1x40x8xbf16>
    %4 = vector.shape_cast %3 : vector<1x1x40x8xbf16> to vector<40x8xbf16>
    %c128 = arith.constant 128 : index
    %c0_8 = arith.constant 0 : index
    %5 = vector.load %arg7[%c128, %c0_8] : memref<168x8xbf16, #tpu.memory_space<vmem>>, vector<40x8xbf16>
    tpu.vector_store %arg7[%c128, %c0_8], %4 {strides = array<i32>} : memref<168x8xbf16, #tpu.memory_space<vmem>>, vector<40x8xbf16>,
    %c0_9 = arith.constant 0 : index
    %c0_10 = arith.constant 0 : index
    %6 = vector.load %arg5[%c0_9, %c0_10] : memref<1x128xf32, #tpu.memory_space<vmem>>, vector<1x128xf32>
    %7 = vector.shape_cast %6 : vector<1x128xf32> to vector<1x128xf32>
    %8 = vector.broadcast %7 : vector<1x128xf32> to vector<128x128xf32>
    %c0_11 = arith.constant 0 : index
    %c0_12 = arith.constant 0 : index
    %9 = vector.load %arg7[%c0_11, %c0_12] : memref<168x8xbf16, #tpu.memory_space<vmem>>, vector<128x8xbf16>
    %c0_13 = arith.constant 0 : index
    %c0_14 = arith.constant 0 : index
    %c0_15 = arith.constant 0 : index
    %10 = vector.load %arg4[%c0_13, %c0_14, %c0_15] : memref<9x8x128xbf16, #tpu.memory_space<vmem>>, vector<1x8x128xbf16>
    %11 = vector.shape_cast %10 : vector<1x8x128xbf16> to vector<8x128xbf16>
    %cst = arith.constant dense<0.000000e+00> : vector<128x128xf32>
    %12 = tpu.matmul %9, %11, %cst {dimension_numbers = #tpu.dot_dimension_numbers<[1], [0], [0], [1], [0, 0, 1, 1], [], []>} : vector<128x8xbf16>, vector<8x128xbf16>, vector<128x128xf32> -> vector<128x128xf32>
    %13 = arith.addf %8, %12 : vector<128x128xf32>
    %c1 = arith.constant 1 : index
    %c0_16 = arith.constant 0 : index
    %14 = vector.load %arg7[%c1, %c0_16] : memref<168x8xbf16, #tpu.memory_space<vmem>>, vector<128x8xbf16>
    %c1_17 = arith.constant 1 : index
    %c0_18 = arith.constant 0 : index
    %c0_19 = arith.constant 0 : index
    %15 = vector.load %arg4[%c1_17, %c0_18, %c0_19] : memref<9x8x128xbf16, #tpu.memory_space<vmem>>, vector<1x8x128xbf16>
    %16 = vector.shape_cast %15 : vector<1x8x128xbf16> to vector<8x128xbf16>
    %cst_20 = arith.constant dense<0.000000e+00> : vector<128x128xf32>
    %17 = tpu.matmul %14, %16, %cst_20 {dimension_numbers = #tpu.dot_dimension_numbers<[1], [0], [0], [1], [0, 0, 1, 1], [], []>} : vector<128x8xbf16>, vector<8x128xbf16>, vector<128x128xf32> -> vector<128x128xf32>
    %18 = arith.addf %13, %17 : vector<128x128xf32>
    %c2 = arith.constant 2 : index
    %c0_21 = arith.constant 0 : index
    %19 = vector.load %arg7[%c2, %c0_21] : memref<168x8xbf16, #tpu.memory_space<vmem>>, vector<128x8xbf16>
    %c2_22 = arith.constant 2 : index
    %c0_23 = arith.constant 0 : index
    %c0_24 = arith.constant 0 : index
    %20 = vector.load %arg4[%c2_22, %c0_23, %c0_24] : memref<9x8x128xbf16, #tpu.memory_space<vmem>>, vector<1x8x128xbf16>
    %21 = vector.shape_cast %20 : vector<1x8x128xbf16> to vector<8x128xbf16>
    %cst_25 = arith.constant dense<0.000000e+00> : vector<128x128xf32>
    %22 = tpu.matmul %19, %21, %cst_25 {dimension_numbers = #tpu.dot_dimension_numbers<[1], [0], [0], [1], [0, 0, 1, 1], [], []>} : vector<128x8xbf16>, vector<8x128xbf16>, vector<128x128xf32> -> vector<128x128xf32>
    %23 = arith.addf %18, %22 : vector<128x128xf32>
    %c16 = arith.constant 16 : index
    %c0_26 = arith.constant 0 : index
    %24 = vector.load %arg7[%c16, %c0_26] : memref<168x8xbf16, #tpu.memory_space<vmem>>, vector<128x8xbf16>
    %c3 = arith.constant 3 : index
    %c0_27 = arith.constant 0 : index
    %c0_28 = arith.constant 0 : index
    %25 = vector.load %arg4[%c3, %c0_27, %c0_28] : memref<9x8x128xbf16, #tpu.memory_space<vmem>>, vector<1x8x128xbf16>
    %26 = vector.shape_cast %25 : vector<1x8x128xbf16> to vector<8x128xbf16>
    %cst_29 = arith.constant dense<0.000000e+00> : vector<128x128xf32>
    %27 = tpu.matmul %24, %26, %cst_29 {dimension_numbers = #tpu.dot_dimension_numbers<[1], [0], [0], [1], [0, 0, 1, 1], [], []>} : vector<128x8xbf16>, vector<8x128xbf16>, vector<128x128xf32> -> vector<128x128xf32>
    %28 = arith.addf %23, %27 : vector<128x128xf32>
    %c17 = arith.constant 17 : index
    %c0_30 = arith.constant 0 : index
    %29 = vector.load %arg7[%c17, %c0_30] : memref<168x8xbf16, #tpu.memory_space<vmem>>, vector<128x8xbf16>
    %c4 = arith.constant 4 : index
    %c0_31 = arith.constant 0 : index
    %c0_32 = arith.constant 0 : index
    %30 = vector.load %arg4[%c4, %c0_31, %c0_32] : memref<9x8x128xbf16, #tpu.memory_space<vmem>>, vector<1x8x128xbf16>
    %31 = vector.shape_cast %30 : vector<1x8x128xbf16> to vector<8x128xbf16>
    %cst_33 = arith.constant dense<0.000000e+00> : vector<128x128xf32>
    %32 = tpu.matmul %29, %31, %cst_33 {dimension_numbers = #tpu.dot_dimension_numbers<[1], [0], [0], [1], [0, 0, 1, 1], [], []>} : vector<128x8xbf16>, vector<8x128xbf16>, vector<128x128xf32> -> vector<128x128xf32>
    %33 = arith.addf %28, %32 : vector<128x128xf32>
    %c18 = arith.constant 18 : index
    %c0_34 = arith.constant 0 : index
    %34 = vector.load %arg7[%c18, %c0_34] : memref<168x8xbf16, #tpu.memory_space<vmem>>, vector<128x8xbf16>
    %c5 = arith.constant 5 : index
    %c0_35 = arith.constant 0 : index
    %c0_36 = arith.constant 0 : index
    %35 = vector.load %arg4[%c5, %c0_35, %c0_36] : memref<9x8x128xbf16, #tpu.memory_space<vmem>>, vector<1x8x128xbf16>
    %36 = vector.shape_cast %35 : vector<1x8x128xbf16> to vector<8x128xbf16>
    %cst_37 = arith.constant dense<0.000000e+00> : vector<128x128xf32>
    %37 = tpu.matmul %34, %36, %cst_37 {dimension_numbers = #tpu.dot_dimension_numbers<[1], [0], [0], [1], [0, 0, 1, 1], [], []>} : vector<128x8xbf16>, vector<8x128xbf16>, vector<128x128xf32> -> vector<128x128xf32>
    %38 = arith.addf %33, %37 : vector<128x128xf32>
    %c32 = arith.constant 32 : index
    %c0_38 = arith.constant 0 : index
    %39 = vector.load %arg7[%c32, %c0_38] : memref<168x8xbf16, #tpu.memory_space<vmem>>, vector<128x8xbf16>
    %c6 = arith.constant 6 : index
    %c0_39 = arith.constant 0 : index
    %c0_40 = arith.constant 0 : index
    %40 = vector.load %arg4[%c6, %c0_39, %c0_40] : memref<9x8x128xbf16, #tpu.memory_space<vmem>>, vector<1x8x128xbf16>
    %41 = vector.shape_cast %40 : vector<1x8x128xbf16> to vector<8x128xbf16>
    %cst_41 = arith.constant dense<0.000000e+00> : vector<128x128xf32>
    %42 = tpu.matmul %39, %41, %cst_41 {dimension_numbers = #tpu.dot_dimension_numbers<[1], [0], [0], [1], [0, 0, 1, 1], [], []>} : vector<128x8xbf16>, vector<8x128xbf16>, vector<128x128xf32> -> vector<128x128xf32>
    %43 = arith.addf %38, %42 : vector<128x128xf32>
    %c33 = arith.constant 33 : index
    %c0_42 = arith.constant 0 : index
    %44 = vector.load %arg7[%c33, %c0_42] : memref<168x8xbf16, #tpu.memory_space<vmem>>, vector<128x8xbf16>
    %c7 = arith.constant 7 : index
    %c0_43 = arith.constant 0 : index
    %c0_44 = arith.constant 0 : index
    %45 = vector.load %arg4[%c7, %c0_43, %c0_44] : memref<9x8x128xbf16, #tpu.memory_space<vmem>>, vector<1x8x128xbf16>
    %46 = vector.shape_cast %45 : vector<1x8x128xbf16> to vector<8x128xbf16>
    %cst_45 = arith.constant dense<0.000000e+00> : vector<128x128xf32>
    %47 = tpu.matmul %44, %46, %cst_45 {dimension_numbers = #tpu.dot_dimension_numbers<[1], [0], [0], [1], [0, 0, 1, 1], [], []>} : vector<128x8xbf16>, vector<8x128xbf16>, vector<128x128xf32> -> vector<128x128xf32>
    %48 = arith.addf %43, %47 : vector<128x128xf32>
    %c34 = arith.constant 34 : index
    %c0_46 = arith.constant 0 : index
    %49 = vector.load %arg7[%c34, %c0_46] : memref<168x8xbf16, #tpu.memory_space<vmem>>, vector<128x8xbf16>
    %c8 = arith.constant 8 : index
    %c0_47 = arith.constant 0 : index
    %c0_48 = arith.constant 0 : index
    %50 = vector.load %arg4[%c8, %c0_47, %c0_48] : memref<9x8x128xbf16, #tpu.memory_space<vmem>>, vector<1x8x128xbf16>
    %51 = vector.shape_cast %50 : vector<1x8x128xbf16> to vector<8x128xbf16>
    %cst_49 = arith.constant dense<0.000000e+00> : vector<128x128xf32>
    %52 = tpu.matmul %49, %51, %cst_49 {dimension_numbers = #tpu.dot_dimension_numbers<[1], [0], [0], [1], [0, 0, 1, 1], [], []>} : vector<128x8xbf16>, vector<8x128xbf16>, vector<128x128xf32> -> vector<128x128xf32>
    %53 = arith.addf %48, %52 : vector<128x128xf32>
    %cst_50 = arith.constant 0.000000e+00 : f32
    %54 = vector.broadcast %cst_50 : f32 to vector<128x128xf32>
    %55 = arith.maximumf %53, %54 : vector<128x128xf32>
    %56 = arith.truncf %55 : vector<128x128xf32> to vector<128x128xbf16>
    %c0_51 = arith.constant 0 : index
    %c0_52 = arith.constant 0 : index
    %c0_53 = arith.constant 0 : index
    %c0_54 = arith.constant 0 : index
    %57 = vector.load %arg6[%c0_51, %c0_52, %c0_53, %c0_54] : memref<1x1x128x128xbf16, #tpu.memory_space<vmem>>, vector<1x1x128x128xbf16>
    %58 = vector.shape_cast %57 : vector<1x1x128x128xbf16> to vector<128x128xbf16>
    %59 = vector.shape_cast %56 : vector<128x128xbf16> to vector<1x1x128x128xbf16>
    tpu.vector_store %arg6[%c0_51, %c0_52, %c0_53, %c0_54], %59 {strides = array<i32>} : memref<1x1x128x128xbf16, #tpu.memory_space<vmem>>, vector<1x1x128x128xbf16>,
    return
  }
  func.func @transform_0(%arg0: i32, %arg1: i32) -> (i32, i32, i32) {
    %c0_i32 = arith.constant 0 : i32
    %c0_i32_0 = arith.constant 0 : i32
    return %arg0, %arg1, %c0_i32 : i32, i32, i32
  }
  func.func @transform_1(%arg0: i32, %arg1: i32) -> (i32, i32, i32, i32) {
    %c0_i32 = arith.constant 0 : i32
    %c0_i32_0 = arith.constant 0 : i32
    %c0_i32_1 = arith.constant 0 : i32
    return %arg0, %arg1, %c0_i32, %c0_i32_0 : i32, i32, i32, i32
  }
  func.func @transform_2(%arg0: i32, %arg1: i32) -> (i32, i32, i32) {
    %c0_i32 = arith.constant 0 : i32
    %c0_i32_0 = arith.constant 0 : i32
    %c0_i32_1 = arith.constant 0 : i32
    %c0_i32_2 = arith.constant 0 : i32
    return %c0_i32, %c0_i32_0, %c0_i32_1 : i32, i32, i32
  }
  func.func @transform_3(%arg0: i32, %arg1: i32) -> (i32, i32) {
    %c0_i32 = arith.constant 0 : i32
    %c0_i32_0 = arith.constant 0 : i32
    %c0_i32_1 = arith.constant 0 : i32
    return %c0_i32, %c0_i32_0 : i32, i32
  }
  func.func @transform_4(%arg0: i32, %arg1: i32) -> (i32, i32, i32, i32) {
    %c0_i32 = arith.constant 0 : i32
    %c0_i32_0 = arith.constant 0 : i32
    %c0_i32_1 = arith.constant 0 : i32
    return %arg0, %arg1, %c0_i32, %c0_i32_0 : i32, i32, i32, i32
  }
}

</mosaic_0001>

<llo_original>
// kernel: tpu_custom_call.1
$region0: #{tpu_custom_call.1}
  #allocation0 [shape = 'u32[]', space=smem, size = 0x4, offset = 0x4, fixed_abs, tag = 'smem constant byte address 0x4 - core index']
  #allocation1 [shape = 'u32[144,128]{1,0:T(1,128)}', space=vmem, size = 0x12000, scoped, tag = 'internal scratch']
  %s0 = inlined_call_operand.hbm [shape: f32[16,128], index: 0, kind: input, shape index: {}]
  %s1 = inlined_call_operand.hbm [shape: f32[16,128], index: 1, kind: output, shape index: {}]
  %s2 = sld [smem:[#allocation0]]
  $region41: #{tpu_custom_call.1} parent=0
    _
  %s4 = ssub.s32 1, %s2
  %s5 = scalar_select 0, %s4, %s2
  $region1: #{tpu_custom_call.1} parent=0
    #allocation2 [shape = 'u8[4096]{0}', space=vmem, size = 0x1000, scoped, tag = 'input window, operand 0, single buffered']
    #allocation3 [shape = 's32[2]{0}', space=sflag, size = 0x8, scoped, tag = 'scoped memory for tpu_custom_call.1']
    #allocation4 [shape = 's32[2]{0}', space=sflag, size = 0x8, scoped, tag = 'scoped memory for tpu_custom_call.1']
    #allocation5 [shape = 'u8[8192]{0}', space=vmem, size = 0x2000, scoped, tag = 'output window, operand 0']
    %6 = vsyncpa [#allocation3], 0
    %7 = vsyncpa [#allocation4], 0
    %s8 = scalar_lea.sflag [#allocation4], 1
    %9 = vsyncpa %s8, 0
    loop: start=0, step=1, limit=4
    $region2: #{tpu_custom_call.1} parent=1 // loop_pre_header
      _
    $region3: #{tpu_custom_call.1} parent=1 // loop_header
      %s11 = sphi 0, %s15
      %p12 = scmp.ge.s32.totalorder %s11, 4
      %s21 = sphi 0, %s23
      %s24 = sphi 0, %s21
      %s25 = sphi 0, %s24
      %s41 = sphi 0, %s25
      %s47 = sphi 0, %s49
      %s50 = sphi 0, %s47
      %s51 = sphi 0, %s50
      %s67 = sphi 0, %s51
    $region4: #{tpu_custom_call.1} parent=1 // loop_header_branch
      %14 = sbr.rel (%p12) target = $region8
    $region5: #{tpu_custom_call.1} parent=1 // loop_body
      %s16 = ssub.s32 %s11, 1
      %s17 = ssub.s32 %s11, 2
      %s18 = sadd.s32 %s11, 1
      %s19 = ssub.s32 %s11, %s18
      %p20 = scmp.eq.s32.totalorder %s19, 0
      %s22 = sadd.s32 %s21, 1
      %s23 = scalar_select %p20, %s21, %s22
      %p26 = pneg %p20
      %p27 = scmp.eq.s32.totalorder %s11, 1
      %p28 = por %p26, %p27
      %p29 = scmp.ne.s32.totalorder %s21, %s24
      %p30 = scmp.eq.s32.totalorder %s11, 0
      %p31 = por %p29, %p30
      %p32 = scmp.ne.s32.totalorder %s21, %s24
      %p33 = scmp.eq.s32.totalorder %s16, 1
      %p34 = por %p32, %p33
      %p35 = scmp.ne.s32.totalorder %s24, %s25
      %p36 = scmp.eq.s32.totalorder %s16, 0
      %p37 = por %p35, %p36
      %p38 = scmp.ne.s32.totalorder %s24, %s25
      %p39 = scmp.eq.s32.totalorder %s17, 1
      %p40 = por %p38, %p39
      %p42 = scmp.ne.s32.totalorder %s25, %s41
      %p43 = scmp.eq.s32.totalorder %s17, 0
      %p44 = por %p42, %p43
      %s45 = ssub.s32 %s11, %s18
      %p46 = scmp.eq.s32.totalorder %s45, 0
      %s48 = sadd.s32 %s47, 1
      %s49 = scalar_select %p46, %s47, %s48
      %p52 = pneg %p46
      %p53 = scmp.eq.s32.totalorder %s11, 1
      %p54 = por %p52, %p53
      %p55 = scmp.ne.s32.totalorder %s47, %s50
      %p56 = scmp.eq.s32.totalorder %s11, 0
      %p57 = por %p55, %p56
      %p58 = scmp.ne.s32.totalorder %s47, %s50
      %p59 = scmp.eq.s32.totalorder %s16, 1
      %p60 = por %p58, %p59
      %p61 = scmp.ne.s32.totalorder %s50, %s51
      %p62 = scmp.eq.s32.totalorder %s16, 0
      %p63 = por %p61, %p62
      %p64 = scmp.ne.s32.totalorder %s50, %s51
      %p65 = scmp.eq.s32.totalorder %s17, 1
      %p66 = por %p64, %p65
      %p68 = scmp.ne.s32.totalorder %s51, %s67
      %p69 = scmp.eq.s32.totalorder %s17, 0
      %p70 = por %p68, %p69
      %p71 = scmp.le.s32.totalorder 1, %s11
      %p72 = scmp.lt.s32.totalorder %s11, 3
      %p73 = pnand %p71, %p72
      %p74 = pneg %p73
      // Predicated region
      $region9: #{tpu_custom_call.1} parent=5 // pred_check
        _
      $region10: #{tpu_custom_call.1} parent=5 // pred_check_branch
        %76 = sbr.rel (%p73) target = $region12
      $region11: #{tpu_custom_call.1} parent=5 // pred_region
        %s77 = ssub.s32 %s11, 1
        // Predicated region
        $region13: #{tpu_custom_call.1} parent=11 // pred_check
          %p78 = pneg %p37
        $region14: #{tpu_custom_call.1} parent=11 // pred_check_branch
          %80 = sbr.rel (%p78) target = $region16
        $region15: #{tpu_custom_call.1} parent=11 // pred_region
          %s82 = ssub.s32 128, 128
          %83 = vsyncadd [#allocation3], %s82
          %s84 = smul.addr %s16, 128
          %s85 = scalar_lea.hbm %s0, %s84
          %s87 = sshll.u32 [#allocation2], 4
          %s88 = int_to_ptr.vmem [resolvable:$true] %s87
          %90 = dma.hbm_to_vmem [thread:$0]  %s85, 128, %s88, [#allocation3]
        $region16: #{tpu_custom_call.1} parent=11 // pred_fallthru
          _
      $region12: #{tpu_custom_call.1} parent=5 // pred_fallthru
        _
      %p91 = scmp.lt.s32.totalorder %s11, 2
      // Predicated region
      $region17: #{tpu_custom_call.1} parent=5 // pred_check
        %p92 = pneg %p91
      $region18: #{tpu_custom_call.1} parent=5 // pred_check_branch
        %94 = sbr.rel (%p92) target = $region20
      $region19: #{tpu_custom_call.1} parent=5 // pred_region
        _
      $region20: #{tpu_custom_call.1} parent=5 // pred_fallthru
        _
      %p95 = scmp.le.s32.totalorder 1, %s11
      %p96 = scmp.lt.s32.totalorder %s11, 3
      %p97 = pnand %p95, %p96
      %p98 = pneg %p97
      // Predicated region
      $region21: #{tpu_custom_call.1} parent=5 // pred_check
        _
      $region22: #{tpu_custom_call.1} parent=5 // pred_check_branch
        %100 = sbr.rel (%p97) target = $region24
      $region23: #{tpu_custom_call.1} parent=5 // pred_region
        %s101 = ssub.s32 %s11, 1
        // Predicated region
        $region25: #{tpu_custom_call.1} parent=23 // pred_check
          %p102 = pneg %p37
        $region26: #{tpu_custom_call.1} parent=23 // pred_check_branch
          %104 = sbr.rel (%p102) target = $region28
        $region27: #{tpu_custom_call.1} parent=23 // pred_region
          %105 = dma.done [#allocation3], 128
        $region28: #{tpu_custom_call.1} parent=23 // pred_fallthru
          _
        %p106 = pneg %p37
        %p107 = pneg %p34
        %p108 = pneg %p63
        %p109 = pneg %p60
        %s110 = sand.u32 %s50, 1
        %s111 = scalar_lea.sflag [#allocation4], %s110
        %s112 = sand.u32 %s50, 1
        %s113 = smul.addr %s112, 8
        %s114 = scalar_lea.vmem [#allocation5], %s113
        %v115 = vld [vmem:[#allocation2] sm:$0xff]
        %v116 = vadd.f32 %v115, 1.0
        %117 = vst [vmem:[%s114] sm:$0xff] %v116
        %s118 = sand.u32 %s50, 1
        %s119 = scalar_lea.sflag [#allocation4], %s118
        %s120 = sand.u32 %s50, 1
        %s121 = smul.addr %s120, 8
        %s122 = scalar_lea.vmem [#allocation5], %s121
        // Predicated region
        $region29: #{tpu_custom_call.1} parent=23 // pred_check
          %p123 = pneg %p60
        $region30: #{tpu_custom_call.1} parent=23 // pred_check_branch
          %125 = sbr.rel (%p123) target = $region32
        $region31: #{tpu_custom_call.1} parent=23 // pred_region
          %s127 = ssub.s32 128, 128
          %128 = vsyncadd %s119, %s127
          %s129 = smul.addr %s16, 128
          %s130 = scalar_lea.hbm %s1, %s129
          %s132 = sshll.u32 %s122, 4
          %s133 = int_to_ptr.vmem [resolvable:$true] %s132
          %135 = dma.vmem_to_hbm [thread:$0]  %s133, 128, %s130, %s119
        $region32: #{tpu_custom_call.1} parent=23 // pred_fallthru
          _
      $region24: #{tpu_custom_call.1} parent=5 // pred_fallthru
        _
      %p136 = scmp.le.s32.totalorder 2, %s11
      // Predicated region
      $region33: #{tpu_custom_call.1} parent=5 // pred_check
        %p137 = pneg %p136
      $region34: #{tpu_custom_call.1} parent=5 // pred_check_branch
        %139 = sbr.rel (%p137) target = $region36
      $region35: #{tpu_custom_call.1} parent=5 // pred_region
        %s140 = ssub.s32 %s11, 2
        // Predicated region
        $region37: #{tpu_custom_call.1} parent=35 // pred_check
          %p141 = pneg %p66
        $region38: #{tpu_custom_call.1} parent=35 // pred_check_branch
          %143 = sbr.rel (%p141) target = $region40
        $region39: #{tpu_custom_call.1} parent=35 // pred_region
          %s144 = sand.u32 %s51, 1
          %s145 = scalar_lea.sflag [#allocation4], %s144
          %s146 = sand.u32 %s51, 1
          %s147 = smul.addr %s146, 8
          %s148 = scalar_lea.vmem [#allocation5], %s147
          %149 = dma.done %s145, 128
        $region40: #{tpu_custom_call.1} parent=35 // pred_fallthru
          _
      $region36: #{tpu_custom_call.1} parent=5 // pred_fallthru
        _
    $region6: #{tpu_custom_call.1} parent=1 // loop_footer
      %s15 = sadd.s32 1, %s11
    $region7: #{tpu_custom_call.1} parent=1 // loop_footer_branch
      %10 = sbr.rel target = $region3
    $region8: #{tpu_custom_call.1} parent=1 // loop_exit
      _
    %150 = vsyncpa [#allocation3], 1
    %s151 = scalar_lea.sflag [#allocation3], 1
    %152 = vsyncpa %s151, 1
    %153 = vsyncpa [#allocation4], 1
    %s154 = scalar_lea.sflag [#allocation4], 1
    %155 = vsyncpa %s154, 1

// kernel: tpu_custom_call.1
$region0: #{tpu_custom_call.1}
  #allocation0 [shape = 'u32[]', space=smem, size = 0x4, offset = 0x4, fixed_abs, tag = 'smem constant byte address 0x4 - core index']
  #allocation1 [shape = 'u32[144,128]{1,0:T(1,128)}', space=vmem, size = 0x12000, scoped, tag = 'internal scratch']
  #allocation2 [shape = 'bf16[168,8]{1,0:T(8,128)(2,1)}', space=vmem, size = 0xa800, scoped, tag = 'scratch operand']
  %s0 = inlined_call_operand.vmem [shape: bf16[1,176,8], index: 0, kind: input, shape index: {}]
  %s1 = inlined_call_operand.vmem [shape: bf16[1,1,40,8], index: 1, kind: input, shape index: {}]
  %s2 = inlined_call_operand.vmem [shape: bf16[9,8,128], index: 2, kind: input, shape index: {}]
  %s3 = inlined_call_operand.vmem [shape: f32[1,128], index: 3, kind: input, shape index: {}]
  %s4 = inlined_call_operand.hbm [shape: bf16[1,1,128,128], index: 4, kind: output, shape index: {}]
  %s5 = sld [smem:[#allocation0]]
  $region26: #{tpu_custom_call.1} parent=0
    _
  %s7 = ssub.s32 1, %s5
  %s8 = scalar_select 0, %s7, %s5
  $region1: #{tpu_custom_call.1} parent=0
    #allocation3 [shape = 'u8[32768]{0}', space=vmem, size = 0x8000, scoped, tag = 'output window, operand 0, single buffered']
    #allocation4 [shape = 's32[1]{0}', space=sflag, size = 0x4, scoped, tag = 'scoped memory for tpu_custom_call.1']
    %9 = vsyncpa [#allocation4], 0
    // Predicated region
    $region2: #{tpu_custom_call.1} parent=1 // pred_check
      _
    $region3: #{tpu_custom_call.1} parent=1 // pred_check_branch
      %11 = sbr.rel (0) target = $region5
    $region4: #{tpu_custom_call.1} parent=1 // pred_region
      _
    $region5: #{tpu_custom_call.1} parent=1 // pred_fallthru
      _
    // Predicated region
    $region6: #{tpu_custom_call.1} parent=1 // pred_check
      _
    $region7: #{tpu_custom_call.1} parent=1 // pred_check_branch
      %13 = sbr.rel (0) target = $region9
    $region8: #{tpu_custom_call.1} parent=1 // pred_region
      _
    $region9: #{tpu_custom_call.1} parent=1 // pred_fallthru
      _
    // Predicated region
    $region10: #{tpu_custom_call.1} parent=1 // pred_check
      _
    $region11: #{tpu_custom_call.1} parent=1 // pred_check_branch
      %15 = sbr.rel (0) target = $region13
    $region12: #{tpu_custom_call.1} parent=1 // pred_region
      _
    $region13: #{tpu_custom_call.1} parent=1 // pred_fallthru
      _
    // Predicated region
    $region14: #{tpu_custom_call.1} parent=1 // pred_check
      _
    $region15: #{tpu_custom_call.1} parent=1 // pred_check_branch
      %17 = sbr.rel (0) target = $region17
    $region16: #{tpu_custom_call.1} parent=1 // pred_region
      _
    $region17: #{tpu_custom_call.1} parent=1 // pred_fallthru
      _
    %v19 = vld [vmem:[%s0] sm:$0xf]
    %v20 = vld [vmem:[%s0 + $0x4] sm:$0xf]
    %v21 = vld [vmem:[%s0 + $0x8] sm:$0xf]
    %v22 = vld [vmem:[%s0 + $0xc] sm:$0xf]
    %v23 = vld [vmem:[%s0 + $0x10] sm:$0xf]
    %v24 = vld [vmem:[%s0 + $0x14] sm:$0xf]
    %v25 = vld [vmem:[%s0 + $0x18] sm:$0xf]
    %v26 = vld [vmem:[%s0 + $0x1c] sm:$0xf]
    %v27 = vld [vmem:[%s0 + $0x20] sm:$0xf]
    %v28 = vld [vmem:[%s0 + $0x24] sm:$0xf]
    %v29 = vld [vmem:[%s0 + $0x28] sm:$0xf]
    %v30 = vld [vmem:[%s0 + $0x2c] sm:$0xf]
    %v31 = vld [vmem:[%s0 + $0x30] sm:$0xf]
    %v32 = vld [vmem:[%s0 + $0x34] sm:$0xf]
    %v33 = vld [vmem:[%s0 + $0x38] sm:$0xf]
    %v34 = vld [vmem:[%s0 + $0x3c] sm:$0xf]
    %vm35 = vcmask 60416
    %36 = vst.msk [vmem:[#allocation2] sm:$0xf] %vm35, %v19
    %37 = vst.msk [vmem:[#allocation2 + $0x4] sm:$0xf] %vm35, %v20
    %38 = vst.msk [vmem:[#allocation2 + $0x8] sm:$0xf] %vm35, %v21
    %39 = vst.msk [vmem:[#allocation2 + $0xc] sm:$0xf] %vm35, %v22
    %40 = vst.msk [vmem:[#allocation2 + $0x10] sm:$0xf] %vm35, %v23
    %41 = vst.msk [vmem:[#allocation2 + $0x14] sm:$0xf] %vm35, %v24
    %42 = vst.msk [vmem:[#allocation2 + $0x18] sm:$0xf] %vm35, %v25
    %43 = vst.msk [vmem:[#allocation2 + $0x1c] sm:$0xf] %vm35, %v26
    %44 = vst.msk [vmem:[#allocation2 + $0x20] sm:$0xf] %vm35, %v27
    %45 = vst.msk [vmem:[#allocation2 + $0x24] sm:$0xf] %vm35, %v28
    %46 = vst.msk [vmem:[#allocation2 + $0x28] sm:$0xf] %vm35, %v29
    %47 = vst.msk [vmem:[#allocation2 + $0x2c] sm:$0xf] %vm35, %v30
    %48 = vst.msk [vmem:[#allocation2 + $0x30] sm:$0xf] %vm35, %v31
    %49 = vst.msk [vmem:[#allocation2 + $0x34] sm:$0xf] %vm35, %v32
    %50 = vst.msk [vmem:[#allocation2 + $0x38] sm:$0xf] %vm35, %v33
    %51 = vst.msk [vmem:[#allocation2 + $0x3c] sm:$0xf] %vm35, %v34
    %v52 = vld [vmem:[%s1] sm:$0xf]
    %v53 = vld [vmem:[%s1 + $0x4] sm:$0xf]
    %v54 = vld [vmem:[%s1 + $0x8] sm:$0xf]
    %v55 = vld [vmem:[%s1 + $0xc] sm:$0xf]
    %v56 = vld [vmem:[%s1 + $0x10] sm:$0xf]
    %57 = vst.msk [vmem:[#allocation2 + $0x40] sm:$0xf] %vm35, %v52
    %58 = vst.msk [vmem:[#allocation2 + $0x44] sm:$0xf] %vm35, %v53
    %59 = vst.msk [vmem:[#allocation2 + $0x48] sm:$0xf] %vm35, %v54
    %60 = vst.msk [vmem:[#allocation2 + $0x4c] sm:$0xf] %vm35, %v55
    %61 = vst.msk [vmem:[#allocation2 + $0x50] sm:$0xf] %vm35, %v56
    %v62 = vld [vmem:[%s3] sm:$0x1]
    %v64 = vlaneseq
    %v65 = vshrl.u32 %v64, 7
    %v66 = vsub.s32 0, %v65
    %v67 = vrot.slane %v62, %v66
    %v69 = vld [vmem:[#allocation2] sm:$0xf]
    %v70 = vld [vmem:[#allocation2 + $0x4] sm:$0xf]
    %v71 = vld [vmem:[#allocation2 + $0x8] sm:$0xf]
    %v72 = vld [vmem:[#allocation2 + $0xc] sm:$0xf]
    %v73 = vld [vmem:[#allocation2 + $0x10] sm:$0xf]
    %v74 = vld [vmem:[#allocation2 + $0x14] sm:$0xf]
    %v75 = vld [vmem:[#allocation2 + $0x18] sm:$0xf]
    %v76 = vld [vmem:[#allocation2 + $0x1c] sm:$0xf]
    %v77 = vld [vmem:[#allocation2 + $0x20] sm:$0xf]
    %v78 = vld [vmem:[#allocation2 + $0x24] sm:$0xf]
    %v79 = vld [vmem:[#allocation2 + $0x28] sm:$0xf]
    %v80 = vld [vmem:[#allocation2 + $0x2c] sm:$0xf]
    %v81 = vld [vmem:[#allocation2 + $0x30] sm:$0xf]
    %v82 = vld [vmem:[#allocation2 + $0x34] sm:$0xf]
    %v83 = vld [vmem:[#allocation2 + $0x38] sm:$0xf]
    %v84 = vld [vmem:[#allocation2 + $0x3c] sm:$0xf]
    %v85 = vld [vmem:[%s2] sm:$0xf]
    %v102 = vunpack.c.l.b16 %v69
    %v103 = vunpack.c.l.b16 %v70
    %v104 = vunpack.c.l.b16 %v71
    %v105 = vunpack.c.l.b16 %v72
    %v106 = vunpack.c.l.b16 %v73
    %v107 = vunpack.c.l.b16 %v74
    %v108 = vunpack.c.l.b16 %v75
    %v109 = vunpack.c.l.b16 %v76
    %v110 = vunpack.c.l.b16 %v77
    %v111 = vunpack.c.l.b16 %v78
    %v112 = vunpack.c.l.b16 %v79
    %v113 = vunpack.c.l.b16 %v80
    %v114 = vunpack.c.l.b16 %v81
    %v115 = vunpack.c.l.b16 %v82
    %v116 = vunpack.c.l.b16 %v83
    %v117 = vunpack.c.l.b16 %v84
    %v118 = vpack.c.b16 %v103, %v102
    %v119 = vpack.c.b16 %v105, %v104
    %v120 = vpack.c.b16 %v107, %v106
    %v121 = vpack.c.b16 %v109, %v108
    %v122 = vpack.c.b16 %v111, %v110
    %v123 = vpack.c.b16 %v113, %v112
    %v124 = vpack.c.b16 %v115, %v114
    %v125 = vpack.c.b16 %v117, %v116
    %vm126 = vcmask 64512
    %v128 = vsel %vm126, %v118, 0
    %v131 = vsel %vm126, %v119, 0
    %v134 = vsel %vm126, %v120, 0
    %v137 = vsel %vm126, %v121, 0
    %v140 = vsel %vm126, %v122, 0
    %v143 = vsel %vm126, %v123, 0
    %v146 = vsel %vm126, %v124, 0
    %v149 = vsel %vm126, %v125, 0
    %vm151 = vcmask 1043456
    %v153 = vsel %vm151, %v85, 0
    %155 = vmatprep.subr.bf16.mxu0 0
    %156 = vmatpush1.bf16.msra.mxu0 %v153
    %157 = vmatprep.subr.bf16.mxu0 0
    %158 = vmatpush1.bf16.msra.mxu0 0
    %159 = vmatprep.subr.bf16.mxu0 0
    %160 = vmatpush1.bf16.msra.mxu0 0
    %161 = vmatprep.subr.bf16.mxu0 0
    %162 = vmatpush1.bf16.msra.mxu0 0
    %163 = vmatprep.subr.bf16.mxu0 0
    %164 = vmatpush1.bf16.msra.mxu0 0
    %165 = vmatprep.subr.bf16.mxu0 0
    %166 = vmatpush1.bf16.msra.mxu0 0
    %167 = vmatprep.subr.bf16.mxu0 0
    %168 = vmatpush1.bf16.msra.mxu0 0
    %169 = vmatprep.subr.bf16.mxu0 0
    %170 = vmatpush1.bf16.msra.mxu0 0
    %171 = vmatprep.subr.bf16.mxu0 0
    %172 = vmatpush1.bf16.msra.mxu0 0
    %173 = vmatprep.subr.bf16.mxu0 0
    %174 = vmatpush1.bf16.msra.mxu0 0
    %175 = vmatprep.subr.bf16.mxu0 0
    %176 = vmatpush1.bf16.msra.mxu0 0
    %177 = vmatprep.subr.bf16.mxu0 0
    %178 = vmatpush1.bf16.msra.mxu0 0
    %179 = vmatprep.subr.bf16.mxu0 0
    %180 = vmatpush1.bf16.msra.mxu0 0
    %181 = vmatprep.subr.bf16.mxu0 0
    %182 = vmatpush1.bf16.msra.mxu0 0
    %183 = vmatprep.subr.bf16.mxu0 0
    %184 = vmatpush1.bf16.msra.mxu0 0
    %185 = vmatprep.subr.bf16.mxu0 0
    %186 = vmatpush1.bf16.msra.mxu0 0
    %187 = vmatprep.mubr.bf16.mxu0 0
    %188 = vmatmul.mubr.bf16.gmra.mrb[0].mxu0 %v128
    %v189 = vpop.f32.mrb[0].mxu0
    %v190 = vadd.f32 0.0, %v189
    %v191 = vpop.f32.mrb[0].mxu0
    %v192 = vpop.f32.mrb[0].mxu0
    %v193 = vadd.f32 0.0, %v192
    %v194 = vpop.f32.mrb[0].mxu0
    %195 = vmatprep.mubr.bf16.mxu0 0
    %196 = vmatmul.mubr.bf16.gmra.mrb[0].mxu0 %v131
    %v197 = vpop.f32.mrb[0].mxu0
    %v198 = vadd.f32 0.0, %v197
    %v199 = vpop.f32.mrb[0].mxu0
    %v200 = vpop.f32.mrb[0].mxu0
    %v201 = vadd.f32 0.0, %v200
    %v202 = vpop.f32.mrb[0].mxu0
    %203 = vmatprep.mubr.bf16.mxu0 0
    %204 = vmatmul.mubr.bf16.gmra.mrb[0].mxu0 %v134
    %v205 = vpop.f32.mrb[0].mxu0
    %v206 = vadd.f32 0.0, %v205
    %v207 = vpop.f32.mrb[0].mxu0
    %v208 = vpop.f32.mrb[0].mxu0
    %v209 = vadd.f32 0.0, %v208
    %v210 = vpop.f32.mrb[0].mxu0
    %211 = vmatprep.mubr.bf16.mxu0 0
    %212 = vmatmul.mubr.bf16.gmra.mrb[0].mxu0 %v137
    %v213 = vpop.f32.mrb[0].mxu0
    %v214 = vadd.f32 0.0, %v213
    %v215 = vpop.f32.mrb[0].mxu0
    %v216 = vpop.f32.mrb[0].mxu0
    %v217 = vadd.f32 0.0, %v216
    %v218 = vpop.f32.mrb[0].mxu0
    %219 = vmatprep.mubr.bf16.mxu0 0
    %220 = vmatmul.mubr.bf16.gmra.mrb[0].mxu0 %v140
    %v221 = vpop.f32.mrb[0].mxu0
    %v222 = vadd.f32 0.0, %v221
    %v223 = vpop.f32.mrb[0].mxu0
    %v224 = vpop.f32.mrb[0].mxu0
    %v225 = vadd.f32 0.0, %v224
    %v226 = vpop.f32.mrb[0].mxu0
    %227 = vmatprep.mubr.bf16.mxu0 0
    %228 = vmatmul.mubr.bf16.gmra.mrb[0].mxu0 %v143
    %v229 = vpop.f32.mrb[0].mxu0
    %v230 = vadd.f32 0.0, %v229
    %v231 = vpop.f32.mrb[0].mxu0
    %v232 = vpop.f32.mrb[0].mxu0
    %v233 = vadd.f32 0.0, %v232
    %v234 = vpop.f32.mrb[0].mxu0
    %235 = vmatprep.mubr.bf16.mxu0 0
    %236 = vmatmul.mubr.bf16.gmra.mrb[0].mxu0 %v146
    %v237 = vpop.f32.mrb[0].mxu0
    %v238 = vadd.f32 0.0, %v237
    %v239 = vpop.f32.mrb[0].mxu0
    %v240 = vpop.f32.mrb[0].mxu0
    %v241 = vadd.f32 0.0, %v240
    %v242 = vpop.f32.mrb[0].mxu0
    %243 = vmatprep.mubr.bf16.mxu0 0
    %244 = vmatmul.mubr.bf16.gmra.mrb[0].mxu0 %v149
    %v245 = vpop.f32.mrb[0].mxu0
    %v246 = vadd.f32 0.0, %v245
    %v247 = vpop.f32.mrb[0].mxu0
    %v248 = vpop.f32.mrb[0].mxu0
    %v249 = vadd.f32 0.0, %v248
    %v250 = vpop.f32.mrb[0].mxu0
    %251 = vdwg.mxu0
    %v252 = vadd.f32 %v67, %v190
    %v253 = vadd.f32 %v67, %v193
    %v254 = vadd.f32 %v67, %v198
    %v255 = vadd.f32 %v67, %v201
    %v256 = vadd.f32 %v67, %v206
    %v257 = vadd.f32 %v67, %v209
    %v258 = vadd.f32 %v67, %v214
    %v259 = vadd.f32 %v67, %v217
    %v260 = vadd.f32 %v67, %v222
    %v261 = vadd.f32 %v67, %v225
    %v262 = vadd.f32 %v67, %v230
    %v263 = vadd.f32 %v67, %v233
    %v264 = vadd.f32 %v67, %v238
    %v265 = vadd.f32 %v67, %v241
    %v266 = vadd.f32 %v67, %v246
    %v267 = vadd.f32 %v67, %v249
    %v268 = vld [vmem:[#allocation2] sm:$0xf]
    %v269 = vld [vmem:[#allocation2 + $0x4] sm:$0xf]
    %v270 = vld [vmem:[#allocation2 + $0x8] sm:$0xf]
    %v271 = vld [vmem:[#allocation2 + $0xc] sm:$0xf]
    %v272 = vld [vmem:[#allocation2 + $0x10] sm:$0xf]
    %v273 = vld [vmem:[#allocation2 + $0x14] sm:$0xf]
    %v274 = vld [vmem:[#allocation2 + $0x18] sm:$0xf]
    %v275 = vld [vmem:[#allocation2 + $0x1c] sm:$0xf]
    %v276 = vld [vmem:[#allocation2 + $0x20] sm:$0xf]
    %v277 = vld [vmem:[#allocation2 + $0x24] sm:$0xf]
    %v278 = vld [vmem:[#allocation2 + $0x28] sm:$0xf]
    %v279 = vld [vmem:[#allocation2 + $0x2c] sm:$0xf]
    %v280 = vld [vmem:[#allocation2 + $0x30] sm:$0xf]
    %v281 = vld [vmem:[#allocation2 + $0x34] sm:$0xf]
    %v282 = vld [vmem:[#allocation2 + $0x38] sm:$0xf]
    %v283 = vld [vmem:[#allocation2 + $0x3c] sm:$0xf]
    %v284 = vld [vmem:[#allocation2 + $0x40] sm:$0x1]
    %s285 = scalar_lea.vmem %s2, 4
    %v286 = vld [vmem:[%s285] sm:$0xf]
    %v304 = vunpack.c.l.b16 %v268
    %v305 = vunpack.c.l.b16 %v269
    %v306 = vunpack.c.l.b16 %v270
    %v307 = vunpack.c.l.b16 %v271
    %v308 = vunpack.c.l.b16 %v272
    %v309 = vunpack.c.l.b16 %v273
    %v310 = vunpack.c.l.b16 %v274
    %v311 = vunpack.c.l.b16 %v275
    %v312 = vunpack.c.l.b16 %v276
    %v313 = vunpack.c.l.b16 %v277
    %v314 = vunpack.c.l.b16 %v278
    %v315 = vunpack.c.l.b16 %v279
    %v316 = vunpack.c.l.b16 %v280
    %v317 = vunpack.c.l.b16 %v281
    %v318 = vunpack.c.l.b16 %v282
    %v319 = vunpack.c.l.b16 %v283
    %v320 = vunpack.c.l.b16 %v284
    %v321 = vpack.c.b16 %v305, %v304
    %v322 = vpack.c.b16 %v307, %v306
    %v323 = vpack.c.b16 %v309, %v308
    %v324 = vpack.c.b16 %v311, %v310
    %v325 = vpack.c.b16 %v313, %v312
    %v326 = vpack.c.b16 %v315, %v314
    %v327 = vpack.c.b16 %v317, %v316
    %v328 = vpack.c.b16 %v319, %v318
    %v329 = vpack.c.b16 %v320, %v320
    %vm330 = vsmask.f32 7424
    %v332 = vshrl.u32 %v321, 16
    %v334 = vshll.u32 %v321, 16
    %v336 = vrot.slane %v334, 1
    %v337 = vor.u32 %v332, %v336
    %v339 = vshll.u32 %v322, 16
    %v341 = vrot.slane %v339, 1
    %v342 = vsel %vm330, %v337, %v341
    %v343 = vshrl.u32 %v322, 16
    %v345 = vor.u32 %v343, %v341
    %v347 = vshll.u32 %v323, 16
    %v349 = vrot.slane %v347, 1
    %v350 = vsel %vm330, %v345, %v349
    %v351 = vshrl.u32 %v323, 16
    %v353 = vor.u32 %v351, %v349
    %v355 = vshll.u32 %v324, 16
    %v357 = vrot.slane %v355, 1
    %v358 = vsel %vm330, %v353, %v357
    %v359 = vshrl.u32 %v324, 16
    %v361 = vor.u32 %v359, %v357
    %v363 = vshll.u32 %v325, 16
    %v365 = vrot.slane %v363, 1
    %v366 = vsel %vm330, %v361, %v365
    %v367 = vshrl.u32 %v325, 16
    %v369 = vor.u32 %v367, %v365
    %v371 = vshll.u32 %v326, 16
    %v373 = vrot.slane %v371, 1
    %v374 = vsel %vm330, %v369, %v373
    %v375 = vshrl.u32 %v326, 16
    %v377 = vor.u32 %v375, %v373
    %v379 = vshll.u32 %v327, 16
    %v381 = vrot.slane %v379, 1
    %v382 = vsel %vm330, %v377, %v381
    %v383 = vshrl.u32 %v327, 16
    %v385 = vor.u32 %v383, %v381
    %v387 = vshll.u32 %v328, 16
    %v389 = vrot.slane %v387, 1
    %v390 = vsel %vm330, %v385, %v389
    %v391 = vshrl.u32 %v328, 16
    %v393 = vor.u32 %v391, %v389
    %v395 = vshll.u32 %v329, 16
    %v397 = vrot.slane %v395, 1
    %v398 = vsel %vm330, %v393, %v397
    %v400 = vsel %vm126, %v342, 0
    %v403 = vsel %vm126, %v350, 0
    %v406 = vsel %vm126, %v358, 0
    %v409 = vsel %vm126, %v366, 0
    %v412 = vsel %vm126, %v374, 0
    %v415 = vsel %vm126, %v382, 0
    %v418 = vsel %vm126, %v390, 0
    %v421 = vsel %vm126, %v398, 0
    %v424 = vsel %vm151, %v286, 0
    %426 = vmatprep.subr.bf16.mxu0 0
    %427 = vmatpush1.bf16.msra.mxu0 %v424
    %428 = vmatprep.subr.bf16.mxu0 0
    %429 = vmatpush1.bf16.msra.mxu0 0
    %430 = vmatprep.subr.bf16.mxu0 0
    %431 = vmatpush1.bf16.msra.mxu0 0
    %432 = vmatprep.subr.bf16.mxu0 0
    %433 = vmatpush1.bf16.msra.mxu0 0
    %434 = vmatprep.subr.bf16.mxu0 0
    %435 = vmatpush1.bf16.msra.mxu0 0
    %436 = vmatprep.subr.bf16.mxu0 0
    %437 = vmatpush1.bf16.msra.mxu0 0
    %438 = vmatprep.subr.bf16.mxu0 0
    %439 = vmatpush1.bf16.msra.mxu0 0
    %440 = vmatprep.subr.bf16.mxu0 0
    %441 = vmatpush1.bf16.msra.mxu0 0
    %442 = vmatprep.subr.bf16.mxu0 0
    %443 = vmatpush1.bf16.msra.mxu0 0
    %444 = vmatprep.subr.bf16.mxu0 0
    %445 = vmatpush1.bf16.msra.mxu0 0
    %446 = vmatprep.subr.bf16.mxu0 0
    %447 = vmatpush1.bf16.msra.mxu0 0
    %448 = vmatprep.subr.bf16.mxu0 0
    %449 = vmatpush1.bf16.msra.mxu0 0
    %450 = vmatprep.subr.bf16.mxu0 0
    %451 = vmatpush1.bf16.msra.mxu0 0
    %452 = vmatprep.subr.bf16.mxu0 0
    %453 = vmatpush1.bf16.msra.mxu0 0
    %454 = vmatprep.subr.bf16.mxu0 0
    %455 = vmatpush1.bf16.msra.mxu0 0
    %456 = vmatprep.subr.bf16.mxu0 0
    %457 = vmatpush1.bf16.msra.mxu0 0
    %458 = vmatprep.mubr.bf16.mxu0 0
    %459 = vmatmul.mubr.bf16.gmra.mrb[0].mxu0 %v400
    %v460 = vpop.f32.mrb[0].mxu0
    %v461 = vadd.f32 0.0, %v460
    %v462 = vpop.f32.mrb[0].mxu0
    %v463 = vpop.f32.mrb[0].mxu0
    %v464 = vadd.f32 0.0, %v463
    %v465 = vpop.f32.mrb[0].mxu0
    %466 = vmatprep.mubr.bf16.mxu0 0
    %467 = vmatmul.mubr.bf16.gmra.mrb[0].mxu0 %v403
    %v468 = vpop.f32.mrb[0].mxu0
    %v469 = vadd.f32 0.0, %v468
    %v470 = vpop.f32.mrb[0].mxu0
    %v471 = vpop.f32.mrb[0].mxu0
    %v472 = vadd.f32 0.0, %v471
    %v473 = vpop.f32.mrb[0].mxu0
    %474 = vmatprep.mubr.bf16.mxu0 0
    %475 = vmatmul.mubr.bf16.gmra.mrb[0].mxu0 %v406
    %v476 = vpop.f32.mrb[0].mxu0
    %v477 = vadd.f32 0.0, %v476
    %v478 = vpop.f32.mrb[0].mxu0
    %v479 = vpop.f32.mrb[0].mxu0
    %v480 = vadd.f32 0.0, %v479
    %v481 = vpop.f32.mrb[0].mxu0
    %482 = vmatprep.mubr.bf16.mxu0 0
    %483 = vmatmul.mubr.bf16.gmra.mrb[0].mxu0 %v409
    %v484 = vpop.f32.mrb[0].mxu0
    %v485 = vadd.f32 0.0, %v484
    %v486 = vpop.f32.mrb[0].mxu0
    %v487 = vpop.f32.mrb[0].mxu0
    %v488 = vadd.f32 0.0, %v487
    %v489 = vpop.f32.mrb[0].mxu0
    %490 = vmatprep.mubr.bf16.mxu0 0
    %491 = vmatmul.mubr.bf16.gmra.mrb[0].mxu0 %v412
    %v492 = vpop.f32.mrb[0].mxu0
    %v493 = vadd.f32 0.0, %v492
    %v494 = vpop.f32.mrb[0].mxu0
    %v495 = vpop.f32.mrb[0].mxu0
    %v496 = vadd.f32 0.0, %v495
    %v497 = vpop.f32.mrb[0].mxu0
    %498 = vmatprep.mubr.bf16.mxu0 0
    %499 = vmatmul.mubr.bf16.gmra.mrb[0].mxu0 %v415
    %v500 = vpop.f32.mrb[0].mxu0
    %v501 = vadd.f32 0.0, %v500
    %v502 = vpop.f32.mrb[0].mxu0
    %v503 = vpop.f32.mrb[0].mxu0
    %v504 = vadd.f32 0.0, %v503
    %v505 = vpop.f32.mrb[0].mxu0
    %506 = vmatprep.mubr.bf16.mxu0 0
    %507 = vmatmul.mubr.bf16.gmra.mrb[0].mxu0 %v418
    %v508 = vpop.f32.mrb[0].mxu0
    %v509 = vadd.f32 0.0, %v508
    %v510 = vpop.f32.mrb[0].mxu0
    %v511 = vpop.f32.mrb[0].mxu0
    %v512 = vadd.f32 0.0, %v511
    %v513 = vpop.f32.mrb[0].mxu0
    %514 = vmatprep.mubr.bf16.mxu0 0
    %515 = vmatmul.mubr.bf16.gmra.mrb[0].mxu0 %v421
    %v516 = vpop.f32.mrb[0].mxu0
    %v517 = vadd.f32 0.0, %v516
    %v518 = vpop.f32.mrb[0].mxu0
    %v519 = vpop.f32.mrb[0].mxu0
    %v520 = vadd.f32 0.0, %v519
    %v521 = vpop.f32.mrb[0].mxu0
    %522 = vdwg.mxu0
    %v523 = vadd.f32 %v252, %v461
    %v524 = vadd.f32 %v253, %v464
    %v525 = vadd.f32 %v254, %v469
    %v526 = vadd.f32 %v255, %v472
    %v527 = vadd.f32 %v256, %v477
    %v528 = vadd.f32 %v257, %v480
    %v529 = vadd.f32 %v258, %v485
    %v530 = vadd.f32 %v259, %v488
    %v531 = vadd.f32 %v260, %v493
    %v532 = vadd.f32 %v261, %v496
    %v533 = vadd.f32 %v262, %v501
    %v534 = vadd.f32 %v263, %v504
    %v535 = vadd.f32 %v264, %v509
    %v536 = vadd.f32 %v265, %v512
    %v537 = vadd.f32 %v266, %v517
    %v538 = vadd.f32 %v267, %v520
    %v539 = vld [vmem:[#allocation2] sm:$0xe]
    %s540 = scalar_lea.vmem %s2, 8
    %v541 = vld [vmem:[%s540] sm:$0xf]
    %v543 = vunpack.c.l.b16 %v539
    %v544 = vpack.c.b16 %v305, %v543
    %vm545 = vcmask 1046528
    %v546 = vrot.slane %v544, 1
    %v547 = vrot.slane %v322, 1
    %v548 = vsel %vm545, %v546, %v547
    %v549 = vrot.slane %v323, 1
    %v550 = vsel %vm545, %v547, %v549
    %v551 = vrot.slane %v324, 1
    %v552 = vsel %vm545, %v549, %v551
    %v553 = vrot.slane %v325, 1
    %v554 = vsel %vm545, %v551, %v553
    %v555 = vrot.slane %v326, 1
    %v556 = vsel %vm545, %v553, %v555
    %v557 = vrot.slane %v327, 1
    %v558 = vsel %vm545, %v555, %v557
    %v559 = vrot.slane %v328, 1
    %v560 = vsel %vm545, %v557, %v559
    %v561 = vrot.slane %v329, 1
    %v562 = vsel %vm545, %v559, %v561
    %v564 = vsel %vm126, %v548, 0
    %v567 = vsel %vm126, %v550, 0
    %v570 = vsel %vm126, %v552, 0
    %v573 = vsel %vm126, %v554, 0
    %v576 = vsel %vm126, %v556, 0
    %v579 = vsel %vm126, %v558, 0
    %v582 = vsel %vm126, %v560, 0
    %v585 = vsel %vm126, %v562, 0
    %v588 = vsel %vm151, %v541, 0
    %590 = vmatprep.subr.bf16.mxu0 0
    %591 = vmatpush1.bf16.msra.mxu0 %v588
    %592 = vmatprep.subr.bf16.mxu0 0
    %593 = vmatpush1.bf16.msra.mxu0 0
    %594 = vmatprep.subr.bf16.mxu0 0
    %595 = vmatpush1.bf16.msra.mxu0 0
    %596 = vmatprep.subr.bf16.mxu0 0
    %597 = vmatpush1.bf16.msra.mxu0 0
    %598 = vmatprep.subr.bf16.mxu0 0
    %599 = vmatpush1.bf16.msra.mxu0 0
    %600 = vmatprep.subr.bf16.mxu0 0
    %601 = vmatpush1.bf16.msra.mxu0 0
    %602 = vmatprep.subr.bf16.mxu0 0
    %603 = vmatpush1.bf16.msra.mxu0 0
    %604 = vmatprep.subr.bf16.mxu0 0
    %605 = vmatpush1.bf16.msra.mxu0 0
    %606 = vmatprep.subr.bf16.mxu0 0
    %607 = vmatpush1.bf16.msra.mxu0 0
    %608 = vmatprep.subr.bf16.mxu0 0
    %609 = vmatpush1.bf16.msra.mxu0 0
    %610 = vmatprep.subr.bf16.mxu0 0
    %611 = vmatpush1.bf16.msra.mxu0 0
    %612 = vmatprep.subr.bf16.mxu0 0
    %613 = vmatpush1.bf16.msra.mxu0 0
    %614 = vmatprep.subr.bf16.mxu0 0
    %615 = vmatpush1.bf16.msra.mxu0 0
    %616 = vmatprep.subr.bf16.mxu0 0
    %617 = vmatpush1.bf16.msra.mxu0 0
    %618 = vmatprep.subr.bf16.mxu0 0
    %619 = vmatpush1.bf16.msra.mxu0 0
    %620 = vmatprep.subr.bf16.mxu0 0
    %621 = vmatpush1.bf16.msra.mxu0 0
    %622 = vmatprep.mubr.bf16.mxu0 0
    %623 = vmatmul.mubr.bf16.gmra.mrb[0].mxu0 %v564
    %v624 = vpop.f32.mrb[0].mxu0
    %v625 = vadd.f32 0.0, %v624
    %v626 = vpop.f32.mrb[0].mxu0
    %v627 = vpop.f32.mrb[0].mxu0
    %v628 = vadd.f32 0.0, %v627
    %v629 = vpop.f32.mrb[0].mxu0
    %630 = vmatprep.mubr.bf16.mxu0 0
    %631 = vmatmul.mubr.bf16.gmra.mrb[0].mxu0 %v567
    %v632 = vpop.f32.mrb[0].mxu0
    %v633 = vadd.f32 0.0, %v632
    %v634 = vpop.f32.mrb[0].mxu0
    %v635 = vpop.f32.mrb[0].mxu0
    %v636 = vadd.f32 0.0, %v635
    %v637 = vpop.f32.mrb[0].mxu0
    %638 = vmatprep.mubr.bf16.mxu0 0
    %639 = vmatmul.mubr.bf16.gmra.mrb[0].mxu0 %v570
    %v640 = vpop.f32.mrb[0].mxu0
    %v641 = vadd.f32 0.0, %v640
    %v642 = vpop.f32.mrb[0].mxu0
    %v643 = vpop.f32.mrb[0].mxu0
    %v644 = vadd.f32 0.0, %v643
    %v645 = vpop.f32.mrb[0].mxu0
    %646 = vmatprep.mubr.bf16.mxu0 0
    %647 = vmatmul.mubr.bf16.gmra.mrb[0].mxu0 %v573
    %v648 = vpop.f32.mrb[0].mxu0
    %v649 = vadd.f32 0.0, %v648
    %v650 = vpop.f32.mrb[0].mxu0
    %v651 = vpop.f32.mrb[0].mxu0
    %v652 = vadd.f32 0.0, %v651
    %v653 = vpop.f32.mrb[0].mxu0
    %654 = vmatprep.mubr.bf16.mxu0 0
    %655 = vmatmul.mubr.bf16.gmra.mrb[0].mxu0 %v576
    %v656 = vpop.f32.mrb[0].mxu0
    %v657 = vadd.f32 0.0, %v656
    %v658 = vpop.f32.mrb[0].mxu0
    %v659 = vpop.f32.mrb[0].mxu0
    %v660 = vadd.f32 0.0, %v659
    %v661 = vpop.f32.mrb[0].mxu0
    %662 = vmatprep.mubr.bf16.mxu0 0
    %663 = vmatmul.mubr.bf16.gmra.mrb[0].mxu0 %v579
    %v664 = vpop.f32.mrb[0].mxu0
    %v665 = vadd.f32 0.0, %v664
    %v666 = vpop.f32.mrb[0].mxu0
    %v667 = vpop.f32.mrb[0].mxu0
    %v668 = vadd.f32 0.0, %v667
    %v669 = vpop.f32.mrb[0].mxu0
    %670 = vmatprep.mubr.bf16.mxu0 0
    %671 = vmatmul.mubr.bf16.gmra.mrb[0].mxu0 %v582
    %v672 = vpop.f32.mrb[0].mxu0
    %v673 = vadd.f32 0.0, %v672
    %v674 = vpop.f32.mrb[0].mxu0
    %v675 = vpop.f32.mrb[0].mxu0
    %v676 = vadd.f32 0.0, %v675
    %v677 = vpop.f32.mrb[0].mxu0
    %678 = vmatprep.mubr.bf16.mxu0 0
    %679 = vmatmul.mubr.bf16.gmra.mrb[0].mxu0 %v585
    %v680 = vpop.f32.mrb[0].mxu0
    %v681 = vadd.f32 0.0, %v680
    %v682 = vpop.f32.mrb[0].mxu0
    %v683 = vpop.f32.mrb[0].mxu0
    %v684 = vadd.f32 0.0, %v683
    %v685 = vpop.f32.mrb[0].mxu0
    %686 = vdwg.mxu0
    %v687 = vadd.f32 %v523, %v625
    %v688 = vadd.f32 %v524, %v628
    %v689 = vadd.f32 %v525, %v633
    %v690 = vadd.f32 %v526, %v636
    %v691 = vadd.f32 %v527, %v641
    %v692 = vadd.f32 %v528, %v644
    %v693 = vadd.f32 %v529, %v649
    %v694 = vadd.f32 %v530, %v652
    %v695 = vadd.f32 %v531, %v657
    %v696 = vadd.f32 %v532, %v660
    %v697 = vadd.f32 %v533, %v665
    %v698 = vadd.f32 %v534, %v668
    %v699 = vadd.f32 %v535, %v673
    %v700 = vadd.f32 %v536, %v676
    %v701 = vadd.f32 %v537, %v681
    %v702 = vadd.f32 %v538, %v684
    %v703 = vld [vmem:[#allocation2 + $0x8] sm:$0xf]
    %v704 = vld [vmem:[#allocation2 + $0xc] sm:$0xf]
    %v705 = vld [vmem:[#allocation2 + $0x10] sm:$0xf]
    %v706 = vld [vmem:[#allocation2 + $0x14] sm:$0xf]
    %v707 = vld [vmem:[#allocation2 + $0x18] sm:$0xf]
    %v708 = vld [vmem:[#allocation2 + $0x1c] sm:$0xf]
    %v709 = vld [vmem:[#allocation2 + $0x20] sm:$0xf]
    %v710 = vld [vmem:[#allocation2 + $0x24] sm:$0xf]
    %v711 = vld [vmem:[#allocation2 + $0x28] sm:$0xf]
    %v712 = vld [vmem:[#allocation2 + $0x2c] sm:$0xf]
    %v713 = vld [vmem:[#allocation2 + $0x30] sm:$0xf]
    %v714 = vld [vmem:[#allocation2 + $0x34] sm:$0xf]
    %v715 = vld [vmem:[#allocation2 + $0x38] sm:$0xf]
    %v716 = vld [vmem:[#allocation2 + $0x3c] sm:$0xf]
    %v717 = vld [vmem:[#allocation2 + $0x40] sm:$0xf]
    %v718 = vld [vmem:[#allocation2 + $0x44] sm:$0xf]
    %s719 = scalar_lea.vmem %s2, 12
    %v720 = vld [vmem:[%s719] sm:$0xf]
    %v737 = vunpack.c.l.b16 %v703
    %v738 = vunpack.c.l.b16 %v704
    %v739 = vunpack.c.l.b16 %v705
    %v740 = vunpack.c.l.b16 %v706
    %v741 = vunpack.c.l.b16 %v707
    %v742 = vunpack.c.l.b16 %v708
    %v743 = vunpack.c.l.b16 %v709
    %v744 = vunpack.c.l.b16 %v710
    %v745 = vunpack.c.l.b16 %v711
    %v746 = vunpack.c.l.b16 %v712
    %v747 = vunpack.c.l.b16 %v713
    %v748 = vunpack.c.l.b16 %v714
    %v749 = vunpack.c.l.b16 %v715
    %v750 = vunpack.c.l.b16 %v716
    %v751 = vunpack.c.l.b16 %v717
    %v752 = vunpack.c.l.b16 %v718
    %v753 = vpack.c.b16 %v738, %v737
    %v754 = vpack.c.b16 %v740, %v739
    %v755 = vpack.c.b16 %v742, %v741
    %v756 = vpack.c.b16 %v744, %v743
    %v757 = vpack.c.b16 %v746, %v745
    %v758 = vpack.c.b16 %v748, %v747
    %v759 = vpack.c.b16 %v750, %v749
    %v760 = vpack.c.b16 %v752, %v751
    %v762 = vsel %vm126, %v753, 0
    %v765 = vsel %vm126, %v754, 0
    %v768 = vsel %vm126, %v755, 0
    %v771 = vsel %vm126, %v756, 0
    %v774 = vsel %vm126, %v757, 0
    %v777 = vsel %vm126, %v758, 0
    %v780 = vsel %vm126, %v759, 0
    %v783 = vsel %vm126, %v760, 0
    %v786 = vsel %vm151, %v720, 0
    %788 = vmatprep.subr.bf16.mxu0 0
    %789 = vmatpush1.bf16.msra.mxu0 %v786
    %790 = vmatprep.subr.bf16.mxu0 0
    %791 = vmatpush1.bf16.msra.mxu0 0
    %792 = vmatprep.subr.bf16.mxu0 0
    %793 = vmatpush1.bf16.msra.mxu0 0
    %794 = vmatprep.subr.bf16.mxu0 0
    %795 = vmatpush1.bf16.msra.mxu0 0
    %796 = vmatprep.subr.bf16.mxu0 0
    %797 = vmatpush1.bf16.msra.mxu0 0
    %798 = vmatprep.subr.bf16.mxu0 0
    %799 = vmatpush1.bf16.msra.mxu0 0
    %800 = vmatprep.subr.bf16.mxu0 0
    %801 = vmatpush1.bf16.msra.mxu0 0
    %802 = vmatprep.subr.bf16.mxu0 0
    %803 = vmatpush1.bf16.msra.mxu0 0
    %804 = vmatprep.subr.bf16.mxu0 0
    %805 = vmatpush1.bf16.msra.mxu0 0
    %806 = vmatprep.subr.bf16.mxu0 0
    %807 = vmatpush1.bf16.msra.mxu0 0
    %808 = vmatprep.subr.bf16.mxu0 0
    %809 = vmatpush1.bf16.msra.mxu0 0
    %810 = vmatprep.subr.bf16.mxu0 0
    %811 = vmatpush1.bf16.msra.mxu0 0
    %812 = vmatprep.subr.bf16.mxu0 0
    %813 = vmatpush1.bf16.msra.mxu0 0
    %814 = vmatprep.subr.bf16.mxu0 0
    %815 = vmatpush1.bf16.msra.mxu0 0
    %816 = vmatprep.subr.bf16.mxu0 0
    %817 = vmatpush1.bf16.msra.mxu0 0
    %818 = vmatprep.subr.bf16.mxu0 0
    %819 = vmatpush1.bf16.msra.mxu0 0
    %820 = vmatprep.mubr.bf16.mxu0 0
    %821 = vmatmul.mubr.bf16.gmra.mrb[0].mxu0 %v762
    %v822 = vpop.f32.mrb[0].mxu0
    %v823 = vadd.f32 0.0, %v822
    %v824 = vpop.f32.mrb[0].mxu0
    %v825 = vpop.f32.mrb[0].mxu0
    %v826 = vadd.f32 0.0, %v825
    %v827 = vpop.f32.mrb[0].mxu0
    %828 = vmatprep.mubr.bf16.mxu0 0
    %829 = vmatmul.mubr.bf16.gmra.mrb[0].mxu0 %v765
    %v830 = vpop.f32.mrb[0].mxu0
    %v831 = vadd.f32 0.0, %v830
    %v832 = vpop.f32.mrb[0].mxu0
    %v833 = vpop.f32.mrb[0].mxu0
    %v834 = vadd.f32 0.0, %v833
    %v835 = vpop.f32.mrb[0].mxu0
    %836 = vmatprep.mubr.bf16.mxu0 0
    %837 = vmatmul.mubr.bf16.gmra.mrb[0].mxu0 %v768
    %v838 = vpop.f32.mrb[0].mxu0
    %v839 = vadd.f32 0.0, %v838
    %v840 = vpop.f32.mrb[0].mxu0
    %v841 = vpop.f32.mrb[0].mxu0
    %v842 = vadd.f32 0.0, %v841
    %v843 = vpop.f32.mrb[0].mxu0
    %844 = vmatprep.mubr.bf16.mxu0 0
    %845 = vmatmul.mubr.bf16.gmra.mrb[0].mxu0 %v771
    %v846 = vpop.f32.mrb[0].mxu0
    %v847 = vadd.f32 0.0, %v846
    %v848 = vpop.f32.mrb[0].mxu0
    %v849 = vpop.f32.mrb[0].mxu0
    %v850 = vadd.f32 0.0, %v849
    %v851 = vpop.f32.mrb[0].mxu0
    %852 = vmatprep.mubr.bf16.mxu0 0
    %853 = vmatmul.mubr.bf16.gmra.mrb[0].mxu0 %v774
    %v854 = vpop.f32.mrb[0].mxu0
    %v855 = vadd.f32 0.0, %v854
    %v856 = vpop.f32.mrb[0].mxu0
    %v857 = vpop.f32.mrb[0].mxu0
    %v858 = vadd.f32 0.0, %v857
    %v859 = vpop.f32.mrb[0].mxu0
    %860 = vmatprep.mubr.bf16.mxu0 0
    %861 = vmatmul.mubr.bf16.gmra.mrb[0].mxu0 %v777
    %v862 = vpop.f32.mrb[0].mxu0
    %v863 = vadd.f32 0.0, %v862
    %v864 = vpop.f32.mrb[0].mxu0
    %v865 = vpop.f32.mrb[0].mxu0
    %v866 = vadd.f32 0.0, %v865
    %v867 = vpop.f32.mrb[0].mxu0
    %868 = vmatprep.mubr.bf16.mxu0 0
    %869 = vmatmul.mubr.bf16.gmra.mrb[0].mxu0 %v780
    %v870 = vpop.f32.mrb[0].mxu0
    %v871 = vadd.f32 0.0, %v870
    %v872 = vpop.f32.mrb[0].mxu0
    %v873 = vpop.f32.mrb[0].mxu0
    %v874 = vadd.f32 0.0, %v873
    %v875 = vpop.f32.mrb[0].mxu0
    %876 = vmatprep.mubr.bf16.mxu0 0
    %877 = vmatmul.mubr.bf16.gmra.mrb[0].mxu0 %v783
    %v878 = vpop.f32.mrb[0].mxu0
    %v879 = vadd.f32 0.0, %v878
    %v880 = vpop.f32.mrb[0].mxu0
    %v881 = vpop.f32.mrb[0].mxu0
    %v882 = vadd.f32 0.0, %v881
    %v883 = vpop.f32.mrb[0].mxu0
    %884 = vdwg.mxu0
    %v885 = vadd.f32 %v687, %v823
    %v886 = vadd.f32 %v688, %v826
    %v887 = vadd.f32 %v689, %v831
    %v888 = vadd.f32 %v690, %v834
    %v889 = vadd.f32 %v691, %v839
    %v890 = vadd.f32 %v692, %v842
    %v891 = vadd.f32 %v693, %v847
    %v892 = vadd.f32 %v694, %v850
    %v893 = vadd.f32 %v695, %v855
    %v894 = vadd.f32 %v696, %v858
    %v895 = vadd.f32 %v697, %v863
    %v896 = vadd.f32 %v698, %v866
    %v897 = vadd.f32 %v699, %v871
    %v898 = vadd.f32 %v700, %v874
    %v899 = vadd.f32 %v701, %v879
    %v900 = vadd.f32 %v702, %v882
    %v901 = vld [vmem:[#allocation2 + $0x8] sm:$0xf]
    %v902 = vld [vmem:[#allocation2 + $0xc] sm:$0xf]
    %v903 = vld [vmem:[#allocation2 + $0x10] sm:$0xf]
    %v904 = vld [vmem:[#allocation2 + $0x14] sm:$0xf]
    %v905 = vld [vmem:[#allocation2 + $0x18] sm:$0xf]
    %v906 = vld [vmem:[#allocation2 + $0x1c] sm:$0xf]
    %v907 = vld [vmem:[#allocation2 + $0x20] sm:$0xf]
    %v908 = vld [vmem:[#allocation2 + $0x24] sm:$0xf]
    %v909 = vld [vmem:[#allocation2 + $0x28] sm:$0xf]
    %v910 = vld [vmem:[#allocation2 + $0x2c] sm:$0xf]
    %v911 = vld [vmem:[#allocation2 + $0x30] sm:$0xf]
    %v912 = vld [vmem:[#allocation2 + $0x34] sm:$0xf]
    %v913 = vld [vmem:[#allocation2 + $0x38] sm:$0xf]
    %v914 = vld [vmem:[#allocation2 + $0x3c] sm:$0xf]
    %v915 = vld [vmem:[#allocation2 + $0x40] sm:$0xf]
    %v916 = vld [vmem:[#allocation2 + $0x44] sm:$0xf]
    %v917 = vld [vmem:[#allocation2 + $0x48] sm:$0x1]
    %s918 = scalar_lea.vmem %s2, 16
    %v919 = vld [vmem:[%s918] sm:$0xf]
    %v937 = vunpack.c.l.b16 %v901
    %v938 = vunpack.c.l.b16 %v902
    %v939 = vunpack.c.l.b16 %v903
    %v940 = vunpack.c.l.b16 %v904
    %v941 = vunpack.c.l.b16 %v905
    %v942 = vunpack.c.l.b16 %v906
    %v943 = vunpack.c.l.b16 %v907
    %v944 = vunpack.c.l.b16 %v908
    %v945 = vunpack.c.l.b16 %v909
    %v946 = vunpack.c.l.b16 %v910
    %v947 = vunpack.c.l.b16 %v911
    %v948 = vunpack.c.l.b16 %v912
    %v949 = vunpack.c.l.b16 %v913
    %v950 = vunpack.c.l.b16 %v914
    %v951 = vunpack.c.l.b16 %v915
    %v952 = vunpack.c.l.b16 %v916
    %v953 = vunpack.c.l.b16 %v917
    %v954 = vpack.c.b16 %v938, %v937
    %v955 = vpack.c.b16 %v940, %v939
    %v956 = vpack.c.b16 %v942, %v941
    %v957 = vpack.c.b16 %v944, %v943
    %v958 = vpack.c.b16 %v946, %v945
    %v959 = vpack.c.b16 %v948, %v947
    %v960 = vpack.c.b16 %v950, %v949
    %v961 = vpack.c.b16 %v952, %v951
    %v962 = vpack.c.b16 %v953, %v953
    %v964 = vshrl.u32 %v954, 16
    %v966 = vshll.u32 %v954, 16
    %v968 = vrot.slane %v966, 1
    %v969 = vor.u32 %v964, %v968
    %v971 = vshll.u32 %v955, 16
    %v973 = vrot.slane %v971, 1
    %v974 = vsel %vm330, %v969, %v973
    %v975 = vshrl.u32 %v955, 16
    %v977 = vor.u32 %v975, %v973
    %v979 = vshll.u32 %v956, 16
    %v981 = vrot.slane %v979, 1
    %v982 = vsel %vm330, %v977, %v981
    %v983 = vshrl.u32 %v956, 16
    %v985 = vor.u32 %v983, %v981
    %v987 = vshll.u32 %v957, 16
    %v989 = vrot.slane %v987, 1
    %v990 = vsel %vm330, %v985, %v989
    %v991 = vshrl.u32 %v957, 16
    %v993 = vor.u32 %v991, %v989
    %v995 = vshll.u32 %v958, 16
    %v997 = vrot.slane %v995, 1
    %v998 = vsel %vm330, %v993, %v997
    %v999 = vshrl.u32 %v958, 16
    %v1001 = vor.u32 %v999, %v997
    %v1003 = vshll.u32 %v959, 16
    %v1005 = vrot.slane %v1003, 1
    %v1006 = vsel %vm330, %v1001, %v1005
    %v1007 = vshrl.u32 %v959, 16
    %v1009 = vor.u32 %v1007, %v1005
    %v1011 = vshll.u32 %v960, 16
    %v1013 = vrot.slane %v1011, 1
    %v1014 = vsel %vm330, %v1009, %v1013
    %v1015 = vshrl.u32 %v960, 16
    %v1017 = vor.u32 %v1015, %v1013
    %v1019 = vshll.u32 %v961, 16
    %v1021 = vrot.slane %v1019, 1
    %v1022 = vsel %vm330, %v1017, %v1021
    %v1023 = vshrl.u32 %v961, 16
    %v1025 = vor.u32 %v1023, %v1021
    %v1027 = vshll.u32 %v962, 16
    %v1029 = vrot.slane %v1027, 1
    %v1030 = vsel %vm330, %v1025, %v1029
    %v1032 = vsel %vm126, %v974, 0
    %v1035 = vsel %vm126, %v982, 0
    %v1038 = vsel %vm126, %v990, 0
    %v1041 = vsel %vm126, %v998, 0
    %v1044 = vsel %vm126, %v1006, 0
    %v1047 = vsel %vm126, %v1014, 0
    %v1050 = vsel %vm126, %v1022, 0
    %v1053 = vsel %vm126, %v1030, 0
    %v1056 = vsel %vm151, %v919, 0
    %1058 = vmatprep.subr.bf16.mxu0 0
    %1059 = vmatpush1.bf16.msra.mxu0 %v1056
    %1060 = vmatprep.subr.bf16.mxu0 0
    %1061 = vmatpush1.bf16.msra.mxu0 0
    %1062 = vmatprep.subr.bf16.mxu0 0
    %1063 = vmatpush1.bf16.msra.mxu0 0
    %1064 = vmatprep.subr.bf16.mxu0 0
    %1065 = vmatpush1.bf16.msra.mxu0 0
    %1066 = vmatprep.subr.bf16.mxu0 0
    %1067 = vmatpush1.bf16.msra.mxu0 0
    %1068 = vmatprep.subr.bf16.mxu0 0
    %1069 = vmatpush1.bf16.msra.mxu0 0
    %1070 = vmatprep.subr.bf16.mxu0 0
    %1071 = vmatpush1.bf16.msra.mxu0 0
    %1072 = vmatprep.subr.bf16.mxu0 0
    %1073 = vmatpush1.bf16.msra.mxu0 0
    %1074 = vmatprep.subr.bf16.mxu0 0
    %1075 = vmatpush1.bf16.msra.mxu0 0
    %1076 = vmatprep.subr.bf16.mxu0 0
    %1077 = vmatpush1.bf16.msra.mxu0 0
    %1078 = vmatprep.subr.bf16.mxu0 0
    %1079 = vmatpush1.bf16.msra.mxu0 0
    %1080 = vmatprep.subr.bf16.mxu0 0
    %1081 = vmatpush1.bf16.msra.mxu0 0
    %1082 = vmatprep.subr.bf16.mxu0 0
    %1083 = vmatpush1.bf16.msra.mxu0 0
    %1084 = vmatprep.subr.bf16.mxu0 0
    %1085 = vmatpush1.bf16.msra.mxu0 0
    %1086 = vmatprep.subr.bf16.mxu0 0
    %1087 = vmatpush1.bf16.msra.mxu0 0
    %1088 = vmatprep.subr.bf16.mxu0 0
    %1089 = vmatpush1.bf16.msra.mxu0 0
    %1090 = vmatprep.mubr.bf16.mxu0 0
    %1091 = vmatmul.mubr.bf16.gmra.mrb[0].mxu0 %v1032
    %v1092 = vpop.f32.mrb[0].mxu0
    %v1093 = vadd.f32 0.0, %v1092
    %v1094 = vpop.f32.mrb[0].mxu0
    %v1095 = vpop.f32.mrb[0].mxu0
    %v1096 = vadd.f32 0.0, %v1095
    %v1097 = vpop.f32.mrb[0].mxu0
    %1098 = vmatprep.mubr.bf16.mxu0 0
    %1099 = vmatmul.mubr.bf16.gmra.mrb[0].mxu0 %v1035
    %v1100 = vpop.f32.mrb[0].mxu0
    %v1101 = vadd.f32 0.0, %v1100
    %v1102 = vpop.f32.mrb[0].mxu0
    %v1103 = vpop.f32.mrb[0].mxu0
    %v1104 = vadd.f32 0.0, %v1103
    %v1105 = vpop.f32.mrb[0].mxu0
    %1106 = vmatprep.mubr.bf16.mxu0 0
    %1107 = vmatmul.mubr.bf16.gmra.mrb[0].mxu0 %v1038
    %v1108 = vpop.f32.mrb[0].mxu0
    %v1109 = vadd.f32 0.0, %v1108
    %v1110 = vpop.f32.mrb[0].mxu0
    %v1111 = vpop.f32.mrb[0].mxu0
    %v1112 = vadd.f32 0.0, %v1111
    %v1113 = vpop.f32.mrb[0].mxu0
    %1114 = vmatprep.mubr.bf16.mxu0 0
    %1115 = vmatmul.mubr.bf16.gmra.mrb[0].mxu0 %v1041
    %v1116 = vpop.f32.mrb[0].mxu0
    %v1117 = vadd.f32 0.0, %v1116
    %v1118 = vpop.f32.mrb[0].mxu0
    %v1119 = vpop.f32.mrb[0].mxu0
    %v1120 = vadd.f32 0.0, %v1119
    %v1121 = vpop.f32.mrb[0].mxu0
    %1122 = vmatprep.mubr.bf16.mxu0 0
    %1123 = vmatmul.mubr.bf16.gmra.mrb[0].mxu0 %v1044
    %v1124 = vpop.f32.mrb[0].mxu0
    %v1125 = vadd.f32 0.0, %v1124
    %v1126 = vpop.f32.mrb[0].mxu0
    %v1127 = vpop.f32.mrb[0].mxu0
    %v1128 = vadd.f32 0.0, %v1127
    %v1129 = vpop.f32.mrb[0].mxu0
    %1130 = vmatprep.mubr.bf16.mxu0 0
    %1131 = vmatmul.mubr.bf16.gmra.mrb[0].mxu0 %v1047
    %v1132 = vpop.f32.mrb[0].mxu0
    %v1133 = vadd.f32 0.0, %v1132
    %v1134 = vpop.f32.mrb[0].mxu0
    %v1135 = vpop.f32.mrb[0].mxu0
    %v1136 = vadd.f32 0.0, %v1135
    %v1137 = vpop.f32.mrb[0].mxu0
    %1138 = vmatprep.mubr.bf16.mxu0 0
    %1139 = vmatmul.mubr.bf16.gmra.mrb[0].mxu0 %v1050
    %v1140 = vpop.f32.mrb[0].mxu0
    %v1141 = vadd.f32 0.0, %v1140
    %v1142 = vpop.f32.mrb[0].mxu0
    %v1143 = vpop.f32.mrb[0].mxu0
    %v1144 = vadd.f32 0.0, %v1143
    %v1145 = vpop.f32.mrb[0].mxu0
    %1146 = vmatprep.mubr.bf16.mxu0 0
    %1147 = vmatmul.mubr.bf16.gmra.mrb[0].mxu0 %v1053
    %v1148 = vpop.f32.mrb[0].mxu0
    %v1149 = vadd.f32 0.0, %v1148
    %v1150 = vpop.f32.mrb[0].mxu0
    %v1151 = vpop.f32.mrb[0].mxu0
    %v1152 = vadd.f32 0.0, %v1151
    %v1153 = vpop.f32.mrb[0].mxu0
    %1154 = vdwg.mxu0
    %v1155 = vadd.f32 %v885, %v1093
    %v1156 = vadd.f32 %v886, %v1096
    %v1157 = vadd.f32 %v887, %v1101
    %v1158 = vadd.f32 %v888, %v1104
    %v1159 = vadd.f32 %v889, %v1109
    %v1160 = vadd.f32 %v890, %v1112
    %v1161 = vadd.f32 %v891, %v1117
    %v1162 = vadd.f32 %v892, %v1120
    %v1163 = vadd.f32 %v893, %v1125
    %v1164 = vadd.f32 %v894, %v1128
    %v1165 = vadd.f32 %v895, %v1133
    %v1166 = vadd.f32 %v896, %v1136
    %v1167 = vadd.f32 %v897, %v1141
    %v1168 = vadd.f32 %v898, %v1144
    %v1169 = vadd.f32 %v899, %v1149
    %v1170 = vadd.f32 %v900, %v1152
    %v1171 = vld [vmem:[#allocation2 + $0x8] sm:$0xe]
    %s1172 = scalar_lea.vmem %s2, 20
    %v1173 = vld [vmem:[%s1172] sm:$0xf]
    %v1175 = vunpack.c.l.b16 %v1171
    %v1176 = vpack.c.b16 %v938, %v1175
    %v1177 = vrot.slane %v1176, 1
    %v1178 = vrot.slane %v955, 1
    %v1179 = vsel %vm545, %v1177, %v1178
    %v1180 = vrot.slane %v956, 1
    %v1181 = vsel %vm545, %v1178, %v1180
    %v1182 = vrot.slane %v957, 1
    %v1183 = vsel %vm545, %v1180, %v1182
    %v1184 = vrot.slane %v958, 1
    %v1185 = vsel %vm545, %v1182, %v1184
    %v1186 = vrot.slane %v959, 1
    %v1187 = vsel %vm545, %v1184, %v1186
    %v1188 = vrot.slane %v960, 1
    %v1189 = vsel %vm545, %v1186, %v1188
    %v1190 = vrot.slane %v961, 1
    %v1191 = vsel %vm545, %v1188, %v1190
    %v1192 = vrot.slane %v962, 1
    %v1193 = vsel %vm545, %v1190, %v1192
    %v1195 = vsel %vm126, %v1179, 0
    %v1198 = vsel %vm126, %v1181, 0
    %v1201 = vsel %vm126, %v1183, 0
    %v1204 = vsel %vm126, %v1185, 0
    %v1207 = vsel %vm126, %v1187, 0
    %v1210 = vsel %vm126, %v1189, 0
    %v1213 = vsel %vm126, %v1191, 0
    %v1216 = vsel %vm126, %v1193, 0
    %v1219 = vsel %vm151, %v1173, 0
    %1221 = vmatprep.subr.bf16.mxu0 0
    %1222 = vmatpush1.bf16.msra.mxu0 %v1219
    %1223 = vmatprep.subr.bf16.mxu0 0
    %1224 = vmatpush1.bf16.msra.mxu0 0
    %1225 = vmatprep.subr.bf16.mxu0 0
    %1226 = vmatpush1.bf16.msra.mxu0 0
    %1227 = vmatprep.subr.bf16.mxu0 0
    %1228 = vmatpush1.bf16.msra.mxu0 0
    %1229 = vmatprep.subr.bf16.mxu0 0
    %1230 = vmatpush1.bf16.msra.mxu0 0
    %1231 = vmatprep.subr.bf16.mxu0 0
    %1232 = vmatpush1.bf16.msra.mxu0 0
    %1233 = vmatprep.subr.bf16.mxu0 0
    %1234 = vmatpush1.bf16.msra.mxu0 0
    %1235 = vmatprep.subr.bf16.mxu0 0
    %1236 = vmatpush1.bf16.msra.mxu0 0
    %1237 = vmatprep.subr.bf16.mxu0 0
    %1238 = vmatpush1.bf16.msra.mxu0 0
    %1239 = vmatprep.subr.bf16.mxu0 0
    %1240 = vmatpush1.bf16.msra.mxu0 0
    %1241 = vmatprep.subr.bf16.mxu0 0
    %1242 = vmatpush1.bf16.msra.mxu0 0
    %1243 = vmatprep.subr.bf16.mxu0 0
    %1244 = vmatpush1.bf16.msra.mxu0 0
    %1245 = vmatprep.subr.bf16.mxu0 0
    %1246 = vmatpush1.bf16.msra.mxu0 0
    %1247 = vmatprep.subr.bf16.mxu0 0
    %1248 = vmatpush1.bf16.msra.mxu0 0
    %1249 = vmatprep.subr.bf16.mxu0 0
    %1250 = vmatpush1.bf16.msra.mxu0 0
    %1251 = vmatprep.subr.bf16.mxu0 0
    %1252 = vmatpush1.bf16.msra.mxu0 0
    %1253 = vmatprep.mubr.bf16.mxu0 0
    %1254 = vmatmul.mubr.bf16.gmra.mrb[0].mxu0 %v1195
    %v1255 = vpop.f32.mrb[0].mxu0
    %v1256 = vadd.f32 0.0, %v1255
    %v1257 = vpop.f32.mrb[0].mxu0
    %v1258 = vpop.f32.mrb[0].mxu0
    %v1259 = vadd.f32 0.0, %v1258
    %v1260 = vpop.f32.mrb[0].mxu0
    %1261 = vmatprep.mubr.bf16.mxu0 0
    %1262 = vmatmul.mubr.bf16.gmra.mrb[0].mxu0 %v1198
    %v1263 = vpop.f32.mrb[0].mxu0
    %v1264 = vadd.f32 0.0, %v1263
    %v1265 = vpop.f32.mrb[0].mxu0
    %v1266 = vpop.f32.mrb[0].mxu0
    %v1267 = vadd.f32 0.0, %v1266
    %v1268 = vpop.f32.mrb[0].mxu0
    %1269 = vmatprep.mubr.bf16.mxu0 0
    %1270 = vmatmul.mubr.bf16.gmra.mrb[0].mxu0 %v1201
    %v1271 = vpop.f32.mrb[0].mxu0
    %v1272 = vadd.f32 0.0, %v1271
    %v1273 = vpop.f32.mrb[0].mxu0
    %v1274 = vpop.f32.mrb[0].mxu0
    %v1275 = vadd.f32 0.0, %v1274
    %v1276 = vpop.f32.mrb[0].mxu0
    %1277 = vmatprep.mubr.bf16.mxu0 0
    %1278 = vmatmul.mubr.bf16.gmra.mrb[0].mxu0 %v1204
    %v1279 = vpop.f32.mrb[0].mxu0
    %v1280 = vadd.f32 0.0, %v1279
    %v1281 = vpop.f32.mrb[0].mxu0
    %v1282 = vpop.f32.mrb[0].mxu0
    %v1283 = vadd.f32 0.0, %v1282
    %v1284 = vpop.f32.mrb[0].mxu0
    %1285 = vmatprep.mubr.bf16.mxu0 0
    %1286 = vmatmul.mubr.bf16.gmra.mrb[0].mxu0 %v1207
    %v1287 = vpop.f32.mrb[0].mxu0
    %v1288 = vadd.f32 0.0, %v1287
    %v1289 = vpop.f32.mrb[0].mxu0
    %v1290 = vpop.f32.mrb[0].mxu0
    %v1291 = vadd.f32 0.0, %v1290
    %v1292 = vpop.f32.mrb[0].mxu0
    %1293 = vmatprep.mubr.bf16.mxu0 0
    %1294 = vmatmul.mubr.bf16.gmra.mrb[0].mxu0 %v1210
    %v1295 = vpop.f32.mrb[0].mxu0
    %v1296 = vadd.f32 0.0, %v1295
    %v1297 = vpop.f32.mrb[0].mxu0
    %v1298 = vpop.f32.mrb[0].mxu0
    %v1299 = vadd.f32 0.0, %v1298
    %v1300 = vpop.f32.mrb[0].mxu0
    %1301 = vmatprep.mubr.bf16.mxu0 0
    %1302 = vmatmul.mubr.bf16.gmra.mrb[0].mxu0 %v1213
    %v1303 = vpop.f32.mrb[0].mxu0
    %v1304 = vadd.f32 0.0, %v1303
    %v1305 = vpop.f32.mrb[0].mxu0
    %v1306 = vpop.f32.mrb[0].mxu0
    %v1307 = vadd.f32 0.0, %v1306
    %v1308 = vpop.f32.mrb[0].mxu0
    %1309 = vmatprep.mubr.bf16.mxu0 0
    %1310 = vmatmul.mubr.bf16.gmra.mrb[0].mxu0 %v1216
    %v1311 = vpop.f32.mrb[0].mxu0
    %v1312 = vadd.f32 0.0, %v1311
    %v1313 = vpop.f32.mrb[0].mxu0
    %v1314 = vpop.f32.mrb[0].mxu0
    %v1315 = vadd.f32 0.0, %v1314
    %v1316 = vpop.f32.mrb[0].mxu0
    %1317 = vdwg.mxu0
    %v1318 = vadd.f32 %v1155, %v1256
    %v1319 = vadd.f32 %v1156, %v1259
    %v1320 = vadd.f32 %v1157, %v1264
    %v1321 = vadd.f32 %v1158, %v1267
    %v1322 = vadd.f32 %v1159, %v1272
    %v1323 = vadd.f32 %v1160, %v1275
    %v1324 = vadd.f32 %v1161, %v1280
    %v1325 = vadd.f32 %v1162, %v1283
    %v1326 = vadd.f32 %v1163, %v1288
    %v1327 = vadd.f32 %v1164, %v1291
    %v1328 = vadd.f32 %v1165, %v1296
    %v1329 = vadd.f32 %v1166, %v1299
    %v1330 = vadd.f32 %v1167, %v1304
    %v1331 = vadd.f32 %v1168, %v1307
    %v1332 = vadd.f32 %v1169, %v1312
    %v1333 = vadd.f32 %v1170, %v1315
    %v1334 = vld [vmem:[#allocation2 + $0x10] sm:$0xf]
    %v1335 = vld [vmem:[#allocation2 + $0x14] sm:$0xf]
    %v1336 = vld [vmem:[#allocation2 + $0x18] sm:$0xf]
    %v1337 = vld [vmem:[#allocation2 + $0x1c] sm:$0xf]
    %v1338 = vld [vmem:[#allocation2 + $0x20] sm:$0xf]
    %v1339 = vld [vmem:[#allocation2 + $0x24] sm:$0xf]
    %v1340 = vld [vmem:[#allocation2 + $0x28] sm:$0xf]
    %v1341 = vld [vmem:[#allocation2 + $0x2c] sm:$0xf]
    %v1342 = vld [vmem:[#allocation2 + $0x30] sm:$0xf]
    %v1343 = vld [vmem:[#allocation2 + $0x34] sm:$0xf]
    %v1344 = vld [vmem:[#allocation2 + $0x38] sm:$0xf]
    %v1345 = vld [vmem:[#allocation2 + $0x3c] sm:$0xf]
    %v1346 = vld [vmem:[#allocation2 + $0x40] sm:$0xf]
    %v1347 = vld [vmem:[#allocation2 + $0x44] sm:$0xf]
    %v1348 = vld [vmem:[#allocation2 + $0x48] sm:$0xf]
    %v1349 = vld [vmem:[#allocation2 + $0x4c] sm:$0xf]
    %s1350 = scalar_lea.vmem %s2, 24
    %v1351 = vld [vmem:[%s1350] sm:$0xf]
    %v1368 = vunpack.c.l.b16 %v1334
    %v1369 = vunpack.c.l.b16 %v1335
    %v1370 = vunpack.c.l.b16 %v1336
    %v1371 = vunpack.c.l.b16 %v1337
    %v1372 = vunpack.c.l.b16 %v1338
    %v1373 = vunpack.c.l.b16 %v1339
    %v1374 = vunpack.c.l.b16 %v1340
    %v1375 = vunpack.c.l.b16 %v1341
    %v1376 = vunpack.c.l.b16 %v1342
    %v1377 = vunpack.c.l.b16 %v1343
    %v1378 = vunpack.c.l.b16 %v1344
    %v1379 = vunpack.c.l.b16 %v1345
    %v1380 = vunpack.c.l.b16 %v1346
    %v1381 = vunpack.c.l.b16 %v1347
    %v1382 = vunpack.c.l.b16 %v1348
    %v1383 = vunpack.c.l.b16 %v1349
    %v1384 = vpack.c.b16 %v1369, %v1368
    %v1385 = vpack.c.b16 %v1371, %v1370
    %v1386 = vpack.c.b16 %v1373, %v1372
    %v1387 = vpack.c.b16 %v1375, %v1374
    %v1388 = vpack.c.b16 %v1377, %v1376
    %v1389 = vpack.c.b16 %v1379, %v1378
    %v1390 = vpack.c.b16 %v1381, %v1380
    %v1391 = vpack.c.b16 %v1383, %v1382
    %v1393 = vsel %vm126, %v1384, 0
    %v1396 = vsel %vm126, %v1385, 0
    %v1399 = vsel %vm126, %v1386, 0
    %v1402 = vsel %vm126, %v1387, 0
    %v1405 = vsel %vm126, %v1388, 0
    %v1408 = vsel %vm126, %v1389, 0
    %v1411 = vsel %vm126, %v1390, 0
    %v1414 = vsel %vm126, %v1391, 0
    %v1417 = vsel %vm151, %v1351, 0
    %1419 = vmatprep.subr.bf16.mxu0 0
    %1420 = vmatpush1.bf16.msra.mxu0 %v1417
    %1421 = vmatprep.subr.bf16.mxu0 0
    %1422 = vmatpush1.bf16.msra.mxu0 0
    %1423 = vmatprep.subr.bf16.mxu0 0
    %1424 = vmatpush1.bf16.msra.mxu0 0
    %1425 = vmatprep.subr.bf16.mxu0 0
    %1426 = vmatpush1.bf16.msra.mxu0 0
    %1427 = vmatprep.subr.bf16.mxu0 0
    %1428 = vmatpush1.bf16.msra.mxu0 0
    %1429 = vmatprep.subr.bf16.mxu0 0
    %1430 = vmatpush1.bf16.msra.mxu0 0
    %1431 = vmatprep.subr.bf16.mxu0 0
    %1432 = vmatpush1.bf16.msra.mxu0 0
    %1433 = vmatprep.subr.bf16.mxu0 0
    %1434 = vmatpush1.bf16.msra.mxu0 0
    %1435 = vmatprep.subr.bf16.mxu0 0
    %1436 = vmatpush1.bf16.msra.mxu0 0
    %1437 = vmatprep.subr.bf16.mxu0 0
    %1438 = vmatpush1.bf16.msra.mxu0 0
    %1439 = vmatprep.subr.bf16.mxu0 0
    %1440 = vmatpush1.bf16.msra.mxu0 0
    %1441 = vmatprep.subr.bf16.mxu0 0
    %1442 = vmatpush1.bf16.msra.mxu0 0
    %1443 = vmatprep.subr.bf16.mxu0 0
    %1444 = vmatpush1.bf16.msra.mxu0 0
    %1445 = vmatprep.subr.bf16.mxu0 0
    %1446 = vmatpush1.bf16.msra.mxu0 0
    %1447 = vmatprep.subr.bf16.mxu0 0
    %1448 = vmatpush1.bf16.msra.mxu0 0
    %1449 = vmatprep.subr.bf16.mxu0 0
    %1450 = vmatpush1.bf16.msra.mxu0 0
    %1451 = vmatprep.mubr.bf16.mxu0 0
    %1452 = vmatmul.mubr.bf16.gmra.mrb[0].mxu0 %v1393
    %v1453 = vpop.f32.mrb[0].mxu0
    %v1454 = vadd.f32 0.0, %v1453
    %v1455 = vpop.f32.mrb[0].mxu0
    %v1456 = vpop.f32.mrb[0].mxu0
    %v1457 = vadd.f32 0.0, %v1456
    %v1458 = vpop.f32.mrb[0].mxu0
    %1459 = vmatprep.mubr.bf16.mxu0 0
    %1460 = vmatmul.mubr.bf16.gmra.mrb[0].mxu0 %v1396
    %v1461 = vpop.f32.mrb[0].mxu0
    %v1462 = vadd.f32 0.0, %v1461
    %v1463 = vpop.f32.mrb[0].mxu0
    %v1464 = vpop.f32.mrb[0].mxu0
    %v1465 = vadd.f32 0.0, %v1464
    %v1466 = vpop.f32.mrb[0].mxu0
    %1467 = vmatprep.mubr.bf16.mxu0 0
    %1468 = vmatmul.mubr.bf16.gmra.mrb[0].mxu0 %v1399
    %v1469 = vpop.f32.mrb[0].mxu0
    %v1470 = vadd.f32 0.0, %v1469
    %v1471 = vpop.f32.mrb[0].mxu0
    %v1472 = vpop.f32.mrb[0].mxu0
    %v1473 = vadd.f32 0.0, %v1472
    %v1474 = vpop.f32.mrb[0].mxu0
    %1475 = vmatprep.mubr.bf16.mxu0 0
    %1476 = vmatmul.mubr.bf16.gmra.mrb[0].mxu0 %v1402
    %v1477 = vpop.f32.mrb[0].mxu0
    %v1478 = vadd.f32 0.0, %v1477
    %v1479 = vpop.f32.mrb[0].mxu0
    %v1480 = vpop.f32.mrb[0].mxu0
    %v1481 = vadd.f32 0.0, %v1480
    %v1482 = vpop.f32.mrb[0].mxu0
    %1483 = vmatprep.mubr.bf16.mxu0 0
    %1484 = vmatmul.mubr.bf16.gmra.mrb[0].mxu0 %v1405
    %v1485 = vpop.f32.mrb[0].mxu0
    %v1486 = vadd.f32 0.0, %v1485
    %v1487 = vpop.f32.mrb[0].mxu0
    %v1488 = vpop.f32.mrb[0].mxu0
    %v1489 = vadd.f32 0.0, %v1488
    %v1490 = vpop.f32.mrb[0].mxu0
    %1491 = vmatprep.mubr.bf16.mxu0 0
    %1492 = vmatmul.mubr.bf16.gmra.mrb[0].mxu0 %v1408
    %v1493 = vpop.f32.mrb[0].mxu0
    %v1494 = vadd.f32 0.0, %v1493
    %v1495 = vpop.f32.mrb[0].mxu0
    %v1496 = vpop.f32.mrb[0].mxu0
    %v1497 = vadd.f32 0.0, %v1496
    %v1498 = vpop.f32.mrb[0].mxu0
    %1499 = vmatprep.mubr.bf16.mxu0 0
    %1500 = vmatmul.mubr.bf16.gmra.mrb[0].mxu0 %v1411
    %v1501 = vpop.f32.mrb[0].mxu0
    %v1502 = vadd.f32 0.0, %v1501
    %v1503 = vpop.f32.mrb[0].mxu0
    %v1504 = vpop.f32.mrb[0].mxu0
    %v1505 = vadd.f32 0.0, %v1504
    %v1506 = vpop.f32.mrb[0].mxu0
    %1507 = vmatprep.mubr.bf16.mxu0 0
    %1508 = vmatmul.mubr.bf16.gmra.mrb[0].mxu0 %v1414
    %v1509 = vpop.f32.mrb[0].mxu0
    %v1510 = vadd.f32 0.0, %v1509
    %v1511 = vpop.f32.mrb[0].mxu0
    %v1512 = vpop.f32.mrb[0].mxu0
    %v1513 = vadd.f32 0.0, %v1512
    %v1514 = vpop.f32.mrb[0].mxu0
    %1515 = vdwg.mxu0
    %v1516 = vadd.f32 %v1318, %v1454
    %v1517 = vadd.f32 %v1319, %v1457
    %v1518 = vadd.f32 %v1320, %v1462
    %v1519 = vadd.f32 %v1321, %v1465
    %v1520 = vadd.f32 %v1322, %v1470
    %v1521 = vadd.f32 %v1323, %v1473
    %v1522 = vadd.f32 %v1324, %v1478
    %v1523 = vadd.f32 %v1325, %v1481
    %v1524 = vadd.f32 %v1326, %v1486
    %v1525 = vadd.f32 %v1327, %v1489
    %v1526 = vadd.f32 %v1328, %v1494
    %v1527 = vadd.f32 %v1329, %v1497
    %v1528 = vadd.f32 %v1330, %v1502
    %v1529 = vadd.f32 %v1331, %v1505
    %v1530 = vadd.f32 %v1332, %v1510
    %v1531 = vadd.f32 %v1333, %v1513
    %v1532 = vld [vmem:[#allocation2 + $0x10] sm:$0xf]
    %v1533 = vld [vmem:[#allocation2 + $0x14] sm:$0xf]
    %v1534 = vld [vmem:[#allocation2 + $0x18] sm:$0xf]
    %v1535 = vld [vmem:[#allocation2 + $0x1c] sm:$0xf]
    %v1536 = vld [vmem:[#allocation2 + $0x20] sm:$0xf]
    %v1537 = vld [vmem:[#allocation2 + $0x24] sm:$0xf]
    %v1538 = vld [vmem:[#allocation2 + $0x28] sm:$0xf]
    %v1539 = vld [vmem:[#allocation2 + $0x2c] sm:$0xf]
    %v1540 = vld [vmem:[#allocation2 + $0x30] sm:$0xf]
    %v1541 = vld [vmem:[#allocation2 + $0x34] sm:$0xf]
    %v1542 = vld [vmem:[#allocation2 + $0x38] sm:$0xf]
    %v1543 = vld [vmem:[#allocation2 + $0x3c] sm:$0xf]
    %v1544 = vld [vmem:[#allocation2 + $0x40] sm:$0xf]
    %v1545 = vld [vmem:[#allocation2 + $0x44] sm:$0xf]
    %v1546 = vld [vmem:[#allocation2 + $0x48] sm:$0xf]
    %v1547 = vld [vmem:[#allocation2 + $0x4c] sm:$0xf]
    %v1548 = vld [vmem:[#allocation2 + $0x50] sm:$0x1]
    %s1549 = scalar_lea.vmem %s2, 28
    %v1550 = vld [vmem:[%s1549] sm:$0xf]
    %v1568 = vunpack.c.l.b16 %v1532
    %v1569 = vunpack.c.l.b16 %v1533
    %v1570 = vunpack.c.l.b16 %v1534
    %v1571 = vunpack.c.l.b16 %v1535
    %v1572 = vunpack.c.l.b16 %v1536
    %v1573 = vunpack.c.l.b16 %v1537
    %v1574 = vunpack.c.l.b16 %v1538
    %v1575 = vunpack.c.l.b16 %v1539
    %v1576 = vunpack.c.l.b16 %v1540
    %v1577 = vunpack.c.l.b16 %v1541
    %v1578 = vunpack.c.l.b16 %v1542
    %v1579 = vunpack.c.l.b16 %v1543
    %v1580 = vunpack.c.l.b16 %v1544
    %v1581 = vunpack.c.l.b16 %v1545
    %v1582 = vunpack.c.l.b16 %v1546
    %v1583 = vunpack.c.l.b16 %v1547
    %v1584 = vunpack.c.l.b16 %v1548
    %v1585 = vpack.c.b16 %v1569, %v1568
    %v1586 = vpack.c.b16 %v1571, %v1570
    %v1587 = vpack.c.b16 %v1573, %v1572
    %v1588 = vpack.c.b16 %v1575, %v1574
    %v1589 = vpack.c.b16 %v1577, %v1576
    %v1590 = vpack.c.b16 %v1579, %v1578
    %v1591 = vpack.c.b16 %v1581, %v1580
    %v1592 = vpack.c.b16 %v1583, %v1582
    %v1593 = vpack.c.b16 %v1584, %v1584
    %v1595 = vshrl.u32 %v1585, 16
    %v1597 = vshll.u32 %v1585, 16
    %v1599 = vrot.slane %v1597, 1
    %v1600 = vor.u32 %v1595, %v1599
    %v1602 = vshll.u32 %v1586, 16
    %v1604 = vrot.slane %v1602, 1
    %v1605 = vsel %vm330, %v1600, %v1604
    %v1606 = vshrl.u32 %v1586, 16
    %v1608 = vor.u32 %v1606, %v1604
    %v1610 = vshll.u32 %v1587, 16
    %v1612 = vrot.slane %v1610, 1
    %v1613 = vsel %vm330, %v1608, %v1612
    %v1614 = vshrl.u32 %v1587, 16
    %v1616 = vor.u32 %v1614, %v1612
    %v1618 = vshll.u32 %v1588, 16
    %v1620 = vrot.slane %v1618, 1
    %v1621 = vsel %vm330, %v1616, %v1620
    %v1622 = vshrl.u32 %v1588, 16
    %v1624 = vor.u32 %v1622, %v1620
    %v1626 = vshll.u32 %v1589, 16
    %v1628 = vrot.slane %v1626, 1
    %v1629 = vsel %vm330, %v1624, %v1628
    %v1630 = vshrl.u32 %v1589, 16
    %v1632 = vor.u32 %v1630, %v1628
    %v1634 = vshll.u32 %v1590, 16
    %v1636 = vrot.slane %v1634, 1
    %v1637 = vsel %vm330, %v1632, %v1636
    %v1638 = vshrl.u32 %v1590, 16
    %v1640 = vor.u32 %v1638, %v1636
    %v1642 = vshll.u32 %v1591, 16
    %v1644 = vrot.slane %v1642, 1
    %v1645 = vsel %vm330, %v1640, %v1644
    %v1646 = vshrl.u32 %v1591, 16
    %v1648 = vor.u32 %v1646, %v1644
    %v1650 = vshll.u32 %v1592, 16
    %v1652 = vrot.slane %v1650, 1
    %v1653 = vsel %vm330, %v1648, %v1652
    %v1654 = vshrl.u32 %v1592, 16
    %v1656 = vor.u32 %v1654, %v1652
    %v1658 = vshll.u32 %v1593, 16
    %v1660 = vrot.slane %v1658, 1
    %v1661 = vsel %vm330, %v1656, %v1660
    %v1663 = vsel %vm126, %v1605, 0
    %v1666 = vsel %vm126, %v1613, 0
    %v1669 = vsel %vm126, %v1621, 0
    %v1672 = vsel %vm126, %v1629, 0
    %v1675 = vsel %vm126, %v1637, 0
    %v1678 = vsel %vm126, %v1645, 0
    %v1681 = vsel %vm126, %v1653, 0
    %v1684 = vsel %vm126, %v1661, 0
    %v1687 = vsel %vm151, %v1550, 0
    %1689 = vmatprep.subr.bf16.mxu0 0
    %1690 = vmatpush1.bf16.msra.mxu0 %v1687
    %1691 = vmatprep.subr.bf16.mxu0 0
    %1692 = vmatpush1.bf16.msra.mxu0 0
    %1693 = vmatprep.subr.bf16.mxu0 0
    %1694 = vmatpush1.bf16.msra.mxu0 0
    %1695 = vmatprep.subr.bf16.mxu0 0
    %1696 = vmatpush1.bf16.msra.mxu0 0
    %1697 = vmatprep.subr.bf16.mxu0 0
    %1698 = vmatpush1.bf16.msra.mxu0 0
    %1699 = vmatprep.subr.bf16.mxu0 0
    %1700 = vmatpush1.bf16.msra.mxu0 0
    %1701 = vmatprep.subr.bf16.mxu0 0
    %1702 = vmatpush1.bf16.msra.mxu0 0
    %1703 = vmatprep.subr.bf16.mxu0 0
    %1704 = vmatpush1.bf16.msra.mxu0 0
    %1705 = vmatprep.subr.bf16.mxu0 0
    %1706 = vmatpush1.bf16.msra.mxu0 0
    %1707 = vmatprep.subr.bf16.mxu0 0
    %1708 = vmatpush1.bf16.msra.mxu0 0
    %1709 = vmatprep.subr.bf16.mxu0 0
    %1710 = vmatpush1.bf16.msra.mxu0 0
    %1711 = vmatprep.subr.bf16.mxu0 0
    %1712 = vmatpush1.bf16.msra.mxu0 0
    %1713 = vmatprep.subr.bf16.mxu0 0
    %1714 = vmatpush1.bf16.msra.mxu0 0
    %1715 = vmatprep.subr.bf16.mxu0 0
    %1716 = vmatpush1.bf16.msra.mxu0 0
    %1717 = vmatprep.subr.bf16.mxu0 0
    %1718 = vmatpush1.bf16.msra.mxu0 0
    %1719 = vmatprep.subr.bf16.mxu0 0
    %1720 = vmatpush1.bf16.msra.mxu0 0
    %1721 = vmatprep.mubr.bf16.mxu0 0
    %1722 = vmatmul.mubr.bf16.gmra.mrb[0].mxu0 %v1663
    %v1723 = vpop.f32.mrb[0].mxu0
    %v1724 = vadd.f32 0.0, %v1723
    %v1725 = vpop.f32.mrb[0].mxu0
    %v1726 = vpop.f32.mrb[0].mxu0
    %v1727 = vadd.f32 0.0, %v1726
    %v1728 = vpop.f32.mrb[0].mxu0
    %1729 = vmatprep.mubr.bf16.mxu0 0
    %1730 = vmatmul.mubr.bf16.gmra.mrb[0].mxu0 %v1666
    %v1731 = vpop.f32.mrb[0].mxu0
    %v1732 = vadd.f32 0.0, %v1731
    %v1733 = vpop.f32.mrb[0].mxu0
    %v1734 = vpop.f32.mrb[0].mxu0
    %v1735 = vadd.f32 0.0, %v1734
    %v1736 = vpop.f32.mrb[0].mxu0
    %1737 = vmatprep.mubr.bf16.mxu0 0
    %1738 = vmatmul.mubr.bf16.gmra.mrb[0].mxu0 %v1669
    %v1739 = vpop.f32.mrb[0].mxu0
    %v1740 = vadd.f32 0.0, %v1739
    %v1741 = vpop.f32.mrb[0].mxu0
    %v1742 = vpop.f32.mrb[0].mxu0
    %v1743 = vadd.f32 0.0, %v1742
    %v1744 = vpop.f32.mrb[0].mxu0
    %1745 = vmatprep.mubr.bf16.mxu0 0
    %1746 = vmatmul.mubr.bf16.gmra.mrb[0].mxu0 %v1672
    %v1747 = vpop.f32.mrb[0].mxu0
    %v1748 = vadd.f32 0.0, %v1747
    %v1749 = vpop.f32.mrb[0].mxu0
    %v1750 = vpop.f32.mrb[0].mxu0
    %v1751 = vadd.f32 0.0, %v1750
    %v1752 = vpop.f32.mrb[0].mxu0
    %1753 = vmatprep.mubr.bf16.mxu0 0
    %1754 = vmatmul.mubr.bf16.gmra.mrb[0].mxu0 %v1675
    %v1755 = vpop.f32.mrb[0].mxu0
    %v1756 = vadd.f32 0.0, %v1755
    %v1757 = vpop.f32.mrb[0].mxu0
    %v1758 = vpop.f32.mrb[0].mxu0
    %v1759 = vadd.f32 0.0, %v1758
    %v1760 = vpop.f32.mrb[0].mxu0
    %1761 = vmatprep.mubr.bf16.mxu0 0
    %1762 = vmatmul.mubr.bf16.gmra.mrb[0].mxu0 %v1678
    %v1763 = vpop.f32.mrb[0].mxu0
    %v1764 = vadd.f32 0.0, %v1763
    %v1765 = vpop.f32.mrb[0].mxu0
    %v1766 = vpop.f32.mrb[0].mxu0
    %v1767 = vadd.f32 0.0, %v1766
    %v1768 = vpop.f32.mrb[0].mxu0
    %1769 = vmatprep.mubr.bf16.mxu0 0
    %1770 = vmatmul.mubr.bf16.gmra.mrb[0].mxu0 %v1681
    %v1771 = vpop.f32.mrb[0].mxu0
    %v1772 = vadd.f32 0.0, %v1771
    %v1773 = vpop.f32.mrb[0].mxu0
    %v1774 = vpop.f32.mrb[0].mxu0
    %v1775 = vadd.f32 0.0, %v1774
    %v1776 = vpop.f32.mrb[0].mxu0
    %1777 = vmatprep.mubr.bf16.mxu0 0
    %1778 = vmatmul.mubr.bf16.gmra.mrb[0].mxu0 %v1684
    %v1779 = vpop.f32.mrb[0].mxu0
    %v1780 = vadd.f32 0.0, %v1779
    %v1781 = vpop.f32.mrb[0].mxu0
    %v1782 = vpop.f32.mrb[0].mxu0
    %v1783 = vadd.f32 0.0, %v1782
    %v1784 = vpop.f32.mrb[0].mxu0
    %1785 = vdwg.mxu0
    %v1786 = vadd.f32 %v1516, %v1724
    %v1787 = vadd.f32 %v1517, %v1727
    %v1788 = vadd.f32 %v1518, %v1732
    %v1789 = vadd.f32 %v1519, %v1735
    %v1790 = vadd.f32 %v1520, %v1740
    %v1791 = vadd.f32 %v1521, %v1743
    %v1792 = vadd.f32 %v1522, %v1748
    %v1793 = vadd.f32 %v1523, %v1751
    %v1794 = vadd.f32 %v1524, %v1756
    %v1795 = vadd.f32 %v1525, %v1759
    %v1796 = vadd.f32 %v1526, %v1764
    %v1797 = vadd.f32 %v1527, %v1767
    %v1798 = vadd.f32 %v1528, %v1772
    %v1799 = vadd.f32 %v1529, %v1775
    %v1800 = vadd.f32 %v1530, %v1780
    %v1801 = vadd.f32 %v1531, %v1783
    %v1802 = vld [vmem:[#allocation2 + $0x10] sm:$0xe]
    %s1803 = scalar_lea.vmem %s2, 32
    %v1804 = vld [vmem:[%s1803] sm:$0xf]
    %v1806 = vunpack.c.l.b16 %v1802
    %v1807 = vpack.c.b16 %v1569, %v1806
    %v1808 = vrot.slane %v1807, 1
    %v1809 = vrot.slane %v1586, 1
    %v1810 = vsel %vm545, %v1808, %v1809
    %v1811 = vrot.slane %v1587, 1
    %v1812 = vsel %vm545, %v1809, %v1811
    %v1813 = vrot.slane %v1588, 1
    %v1814 = vsel %vm545, %v1811, %v1813
    %v1815 = vrot.slane %v1589, 1
    %v1816 = vsel %vm545, %v1813, %v1815
    %v1817 = vrot.slane %v1590, 1
    %v1818 = vsel %vm545, %v1815, %v1817
    %v1819 = vrot.slane %v1591, 1
    %v1820 = vsel %vm545, %v1817, %v1819
    %v1821 = vrot.slane %v1592, 1
    %v1822 = vsel %vm545, %v1819, %v1821
    %v1823 = vrot.slane %v1593, 1
    %v1824 = vsel %vm545, %v1821, %v1823
    %v1826 = vsel %vm126, %v1810, 0
    %v1829 = vsel %vm126, %v1812, 0
    %v1832 = vsel %vm126, %v1814, 0
    %v1835 = vsel %vm126, %v1816, 0
    %v1838 = vsel %vm126, %v1818, 0
    %v1841 = vsel %vm126, %v1820, 0
    %v1844 = vsel %vm126, %v1822, 0
    %v1847 = vsel %vm126, %v1824, 0
    %v1850 = vsel %vm151, %v1804, 0
    %1852 = vmatprep.subr.bf16.mxu0 0
    %1853 = vmatpush1.bf16.msra.mxu0 %v1850
    %1854 = vmatprep.subr.bf16.mxu0 0
    %1855 = vmatpush1.bf16.msra.mxu0 0
    %1856 = vmatprep.subr.bf16.mxu0 0
    %1857 = vmatpush1.bf16.msra.mxu0 0
    %1858 = vmatprep.subr.bf16.mxu0 0
    %1859 = vmatpush1.bf16.msra.mxu0 0
    %1860 = vmatprep.subr.bf16.mxu0 0
    %1861 = vmatpush1.bf16.msra.mxu0 0
    %1862 = vmatprep.subr.bf16.mxu0 0
    %1863 = vmatpush1.bf16.msra.mxu0 0
    %1864 = vmatprep.subr.bf16.mxu0 0
    %1865 = vmatpush1.bf16.msra.mxu0 0
    %1866 = vmatprep.subr.bf16.mxu0 0
    %1867 = vmatpush1.bf16.msra.mxu0 0
    %1868 = vmatprep.subr.bf16.mxu0 0
    %1869 = vmatpush1.bf16.msra.mxu0 0
    %1870 = vmatprep.subr.bf16.mxu0 0
    %1871 = vmatpush1.bf16.msra.mxu0 0
    %1872 = vmatprep.subr.bf16.mxu0 0
    %1873 = vmatpush1.bf16.msra.mxu0 0
    %1874 = vmatprep.subr.bf16.mxu0 0
    %1875 = vmatpush1.bf16.msra.mxu0 0
    %1876 = vmatprep.subr.bf16.mxu0 0
    %1877 = vmatpush1.bf16.msra.mxu0 0
    %1878 = vmatprep.subr.bf16.mxu0 0
    %1879 = vmatpush1.bf16.msra.mxu0 0
    %1880 = vmatprep.subr.bf16.mxu0 0
    %1881 = vmatpush1.bf16.msra.mxu0 0
    %1882 = vmatprep.subr.bf16.mxu0 0
    %1883 = vmatpush1.bf16.msra.mxu0 0
    %1884 = vmatprep.mubr.bf16.mxu0 0
    %1885 = vmatmul.mubr.bf16.gmra.mrb[0].mxu0 %v1826
    %v1886 = vpop.f32.mrb[0].mxu0
    %v1887 = vadd.f32 0.0, %v1886
    %v1888 = vpop.f32.mrb[0].mxu0
    %v1889 = vpop.f32.mrb[0].mxu0
    %v1890 = vadd.f32 0.0, %v1889
    %v1891 = vpop.f32.mrb[0].mxu0
    %1892 = vmatprep.mubr.bf16.mxu0 0
    %1893 = vmatmul.mubr.bf16.gmra.mrb[0].mxu0 %v1829
    %v1894 = vpop.f32.mrb[0].mxu0
    %v1895 = vadd.f32 0.0, %v1894
    %v1896 = vpop.f32.mrb[0].mxu0
    %v1897 = vpop.f32.mrb[0].mxu0
    %v1898 = vadd.f32 0.0, %v1897
    %v1899 = vpop.f32.mrb[0].mxu0
    %1900 = vmatprep.mubr.bf16.mxu0 0
    %1901 = vmatmul.mubr.bf16.gmra.mrb[0].mxu0 %v1832
    %v1902 = vpop.f32.mrb[0].mxu0
    %v1903 = vadd.f32 0.0, %v1902
    %v1904 = vpop.f32.mrb[0].mxu0
    %v1905 = vpop.f32.mrb[0].mxu0
    %v1906 = vadd.f32 0.0, %v1905
    %v1907 = vpop.f32.mrb[0].mxu0
    %1908 = vmatprep.mubr.bf16.mxu0 0
    %1909 = vmatmul.mubr.bf16.gmra.mrb[0].mxu0 %v1835
    %v1910 = vpop.f32.mrb[0].mxu0
    %v1911 = vadd.f32 0.0, %v1910
    %v1912 = vpop.f32.mrb[0].mxu0
    %v1913 = vpop.f32.mrb[0].mxu0
    %v1914 = vadd.f32 0.0, %v1913
    %v1915 = vpop.f32.mrb[0].mxu0
    %1916 = vmatprep.mubr.bf16.mxu0 0
    %1917 = vmatmul.mubr.bf16.gmra.mrb[0].mxu0 %v1838
    %v1918 = vpop.f32.mrb[0].mxu0
    %v1919 = vadd.f32 0.0, %v1918
    %v1920 = vpop.f32.mrb[0].mxu0
    %v1921 = vpop.f32.mrb[0].mxu0
    %v1922 = vadd.f32 0.0, %v1921
    %v1923 = vpop.f32.mrb[0].mxu0
    %1924 = vmatprep.mubr.bf16.mxu0 0
    %1925 = vmatmul.mubr.bf16.gmra.mrb[0].mxu0 %v1841
    %v1926 = vpop.f32.mrb[0].mxu0
    %v1927 = vadd.f32 0.0, %v1926
    %v1928 = vpop.f32.mrb[0].mxu0
    %v1929 = vpop.f32.mrb[0].mxu0
    %v1930 = vadd.f32 0.0, %v1929
    %v1931 = vpop.f32.mrb[0].mxu0
    %1932 = vmatprep.mubr.bf16.mxu0 0
    %1933 = vmatmul.mubr.bf16.gmra.mrb[0].mxu0 %v1844
    %v1934 = vpop.f32.mrb[0].mxu0
    %v1935 = vadd.f32 0.0, %v1934
    %v1936 = vpop.f32.mrb[0].mxu0
    %v1937 = vpop.f32.mrb[0].mxu0
    %v1938 = vadd.f32 0.0, %v1937
    %v1939 = vpop.f32.mrb[0].mxu0
    %1940 = vmatprep.mubr.bf16.mxu0 0
    %1941 = vmatmul.mubr.bf16.gmra.mrb[0].mxu0 %v1847
    %v1942 = vpop.f32.mrb[0].mxu0
    %v1943 = vadd.f32 0.0, %v1942
    %v1944 = vpop.f32.mrb[0].mxu0
    %v1945 = vpop.f32.mrb[0].mxu0
    %v1946 = vadd.f32 0.0, %v1945
    %v1947 = vpop.f32.mrb[0].mxu0
    %1948 = vdwg.mxu0
    %v1949 = vadd.f32 %v1786, %v1887
    %v1950 = vadd.f32 %v1787, %v1890
    %v1951 = vadd.f32 %v1788, %v1895
    %v1952 = vadd.f32 %v1789, %v1898
    %v1953 = vadd.f32 %v1790, %v1903
    %v1954 = vadd.f32 %v1791, %v1906
    %v1955 = vadd.f32 %v1792, %v1911
    %v1956 = vadd.f32 %v1793, %v1914
    %v1957 = vadd.f32 %v1794, %v1919
    %v1958 = vadd.f32 %v1795, %v1922
    %v1959 = vadd.f32 %v1796, %v1927
    %v1960 = vadd.f32 %v1797, %v1930
    %v1961 = vadd.f32 %v1798, %v1935
    %v1962 = vadd.f32 %v1799, %v1938
    %v1963 = vadd.f32 %v1800, %v1943
    %v1964 = vadd.f32 %v1801, %v1946
    %v1965 = vmax.f32 %v1949, 0.0
    %v1966 = vmax.f32 %v1950, 0.0
    %v1967 = vmax.f32 %v1951, 0.0
    %v1968 = vmax.f32 %v1952, 0.0
    %v1969 = vmax.f32 %v1953, 0.0
    %v1970 = vmax.f32 %v1954, 0.0
    %v1971 = vmax.f32 %v1955, 0.0
    %v1972 = vmax.f32 %v1956, 0.0
    %v1973 = vmax.f32 %v1957, 0.0
    %v1974 = vmax.f32 %v1958, 0.0
    %v1975 = vmax.f32 %v1959, 0.0
    %v1976 = vmax.f32 %v1960, 0.0
    %v1977 = vmax.f32 %v1961, 0.0
    %v1978 = vmax.f32 %v1962, 0.0
    %v1979 = vmax.f32 %v1963, 0.0
    %v1980 = vmax.f32 %v1964, 0.0
    %v1981 = vpack.c.bf16 %v1966, %v1965
    %v1982 = vpack.c.bf16 %v1968, %v1967
    %v1983 = vpack.c.bf16 %v1970, %v1969
    %v1984 = vpack.c.bf16 %v1972, %v1971
    %v1985 = vpack.c.bf16 %v1974, %v1973
    %v1986 = vpack.c.bf16 %v1976, %v1975
    %v1987 = vpack.c.bf16 %v1978, %v1977
    %v1988 = vpack.c.bf16 %v1980, %v1979
    %v1997 = vunpack.c.l.b16 %v1981
    %v1998 = vunpack.c.h.b16 %v1981
    %v1999 = vunpack.c.l.b16 %v1982
    %v2000 = vunpack.c.h.b16 %v1982
    %v2001 = vunpack.c.l.b16 %v1983
    %v2002 = vunpack.c.h.b16 %v1983
    %v2003 = vunpack.c.l.b16 %v1984
    %v2004 = vunpack.c.h.b16 %v1984
    %v2005 = vunpack.c.l.b16 %v1985
    %v2006 = vunpack.c.h.b16 %v1985
    %v2007 = vunpack.c.l.b16 %v1986
    %v2008 = vunpack.c.h.b16 %v1986
    %v2009 = vunpack.c.l.b16 %v1987
    %v2010 = vunpack.c.h.b16 %v1987
    %v2011 = vunpack.c.l.b16 %v1988
    %v2012 = vunpack.c.h.b16 %v1988
    %v2013 = vpack.c.b16 %v1997, %v1997
    %v2014 = vpack.c.b16 %v1998, %v1998
    %v2015 = vpack.c.b16 %v1999, %v1999
    %v2016 = vpack.c.b16 %v2000, %v2000
    %v2017 = vpack.c.b16 %v2001, %v2001
    %v2018 = vpack.c.b16 %v2002, %v2002
    %v2019 = vpack.c.b16 %v2003, %v2003
    %v2020 = vpack.c.b16 %v2004, %v2004
    %v2021 = vpack.c.b16 %v2005, %v2005
    %v2022 = vpack.c.b16 %v2006, %v2006
    %v2023 = vpack.c.b16 %v2007, %v2007
    %v2024 = vpack.c.b16 %v2008, %v2008
    %v2025 = vpack.c.b16 %v2009, %v2009
    %v2026 = vpack.c.b16 %v2010, %v2010
    %v2027 = vpack.c.b16 %v2011, %v2011
    %v2028 = vpack.c.b16 %v2012, %v2012
    %2045 = vst [vmem:[#allocation3] sm:$0xf] %v2013
    %2046 = vst [vmem:[#allocation3 + $0x4] sm:$0xf] %v2014
    %2047 = vst [vmem:[#allocation3 + $0x8] sm:$0xf] %v2015
    %2048 = vst [vmem:[#allocation3 + $0xc] sm:$0xf] %v2016
    %2049 = vst [vmem:[#allocation3 + $0x10] sm:$0xf] %v2017
    %2050 = vst [vmem:[#allocation3 + $0x14] sm:$0xf] %v2018
    %2051 = vst [vmem:[#allocation3 + $0x18] sm:$0xf] %v2019
    %2052 = vst [vmem:[#allocation3 + $0x1c] sm:$0xf] %v2020
    %2053 = vst [vmem:[#allocation3 + $0x20] sm:$0xf] %v2021
    %2054 = vst [vmem:[#allocation3 + $0x24] sm:$0xf] %v2022
    %2055 = vst [vmem:[#allocation3 + $0x28] sm:$0xf] %v2023
    %2056 = vst [vmem:[#allocation3 + $0x2c] sm:$0xf] %v2024
    %2057 = vst [vmem:[#allocation3 + $0x30] sm:$0xf] %v2025
    %2058 = vst [vmem:[#allocation3 + $0x34] sm:$0xf] %v2026
    %2059 = vst [vmem:[#allocation3 + $0x38] sm:$0xf] %v2027
    %2060 = vst [vmem:[#allocation3 + $0x3c] sm:$0xf] %v2028
    // Predicated region
    $region18: #{tpu_custom_call.1} parent=1 // pred_check
      _
    $region19: #{tpu_custom_call.1} parent=1 // pred_check_branch
      %2062 = sbr.rel (0) target = $region21
    $region20: #{tpu_custom_call.1} parent=1 // pred_region
      %s2064 = ssub.s32 1024, 1024
      %2065 = vsyncadd [#allocation4], %s2064
      %s2066 = sshll.u32 [#allocation3], 4
      %s2067 = int_to_ptr.vmem [resolvable:$true] %s2066
      %2072 = dma.vmem_to_hbm [thread:$0]  %s2067, 1024, %s4, [#allocation4], 64, 64, 4
    $region21: #{tpu_custom_call.1} parent=1 // pred_fallthru
      _
    // Predicated region
    $region22: #{tpu_custom_call.1} parent=1 // pred_check
      _
    $region23: #{tpu_custom_call.1} parent=1 // pred_check_branch
      %2074 = sbr.rel (0) target = $region25
    $region24: #{tpu_custom_call.1} parent=1 // pred_region
      %2075 = dma.done [#allocation4], 1024
    $region25: #{tpu_custom_call.1} parent=1 // pred_fallthru
      _
    %2076 = vsyncpa [#allocation4], 1

</llo_original>
